<compile_context>
chip_gen: v7x
topology: tpu7x:2x2x1
jax: 0.10.0
libtpu: 0.0.40
codegen_flags: <defaults>
</compile_context>

<pallas_src>
import jax
import jax.numpy as jnp
from jax.experimental import pallas as pl
from jax.experimental.pallas import tpu as pltpu

_SUBLANE = 8
_LANE = 128
_TARGET_BLOCK_BYTES = 4 * 1024 * 1024   # native input bytes DMA'd per grid step
_MAX_TILE_ROWS = 16384                  # caps the f32-expanded block at 8 MiB
_SMALL_N = 256 * 1024                   # below this, a plain XLA reduce wins


def _round_up(x, m):
    return ((x + m - 1) // m) * m


def _sublane_multiple(dtype):
    """Packed-sublane multiple for the second-to-last block dim (8/16/32)."""
    itemsize = jnp.dtype(dtype).itemsize
    return _SUBLANE * max(1, 4 // itemsize)


def _num_tensorcores():
    """Best-effort TensorCores-per-device detection (megacore / v7x => 2)."""
    try:
        kind = jax.devices()[0].device_kind.lower()
    except Exception:
        return 1
    if any(tag in kind for tag in ("v4", "v5p", "v7", "7x")):
        return 2
    return 1


def _vmem_capacity_bytes():
    try:
        return int(pltpu.get_tpu_info().vmem_capacity_bytes)
    except Exception:
        return 64 * 1024 * 1024


def _make_sumsq_kernel(rows, tile_rows, tiles_per_split, acc_rows, any_partial):
    """Per-split partial sum-of-squares into an (acc_rows, 128) VMEM accumulator."""

    def accumulate(acc_ref, x):
        xx = x * x
        # Wide accumulator: acc_rows (usually 64) independent-per-sublane-slab
        # add chains, pure vreg-vreg VPU adds, no per-step cross-lane reduce.
        acc_ref[...] += xx.reshape(tile_rows // acc_rows, acc_rows, _LANE).sum(axis=0)

    def kernel(x_ref, o_ref, acc_ref):
        p = pl.program_id(0)
        j = pl.program_id(1)

        @pl.when(j == 0)
        def _init():
            acc_ref[...] = jnp.zeros_like(acc_ref)

        if not any_partial:
            # Static fast path: every block is fully in-bounds, no masking ops.
            accumulate(acc_ref, x_ref[...].astype(jnp.float32))
        else:
            row_start = (p * tiles_per_split + j) * tile_rows
            is_partial = row_start + tile_rows > rows

            @pl.when(jnp.logical_not(is_partial))
            def _full_block():
                accumulate(acc_ref, x_ref[...].astype(jnp.float32))

            @pl.when(is_partial)
            def _partial_block():
                # Mask (select, not multiply) BEFORE squaring so garbage/NaN
                # padding in the out-of-bounds rows is zeroed.
                x = x_ref[...].astype(jnp.float32)
                row_ids = row_start + jax.lax.broadcasted_iota(
                    jnp.int32, (tile_rows, _LANE), 0)
                accumulate(acc_ref, jnp.where(row_ids < rows, x, 0.0))

        @pl.when(j == pl.num_programs(1) - 1)
        def _finalize():
            o_ref[0] = acc_ref[...]

    return kernel


def _sumsq_pallas(x):
    """Sum of squares over all elements of `x` via a Pallas reduction kernel."""
    n = x.size
    itemsize = jnp.dtype(x.dtype).itemsize

    if n % _LANE == 0:
        # Layout-preserving reshape of the contiguous data: no extra HBM copy.
        rows = n // _LANE
        x2d = jnp.reshape(x, (rows, _LANE))
    else:
        # Rare misaligned-size fallback: pad the flat tail up to a lane
        # multiple (zeros don't change the sum of squares). Pays one copy.
        flat = jnp.ravel(x)
        pad = (-n) % _LANE
        flat = jnp.pad(flat, (0, pad))
        rows = (n + pad) // _LANE
        x2d = flat.reshape(rows, _LANE)

    # Dtype-scaled block: constant ~4 MiB of native DMA per grid step, rounded
    # to the packed sublane multiple (8 f32 / 16 bf16 / 32 int8).
    mult = _sublane_multiple(x.dtype)
    target_rows = max(mult, _TARGET_BLOCK_BYTES // (itemsize * _LANE))
    target_rows = min(_round_up(target_rows, 64), _MAX_TILE_ROWS)
    tile_rows = min(target_rows, _round_up(rows, mult))
    tiles_total = pl.cdiv(rows, tile_rows)

    # Wide (64,128) accumulator when tile_rows allows it; otherwise the
    # largest power-of-two divisor down to the 8-row sublane floor.
    acc_rows = 64
    while tile_rows % acc_rows:
        acc_rows //= 2

    # Split across TensorCores only when the chip has >1 core per device AND
    # the split divides the tile count evenly (no clamped index_map, no
    # duplicated-block DMA). v5e/v6e always take n_split == 1.
    n_split = _num_tensorcores()
    if n_split > 1 and (tiles_total < n_split or tiles_total % n_split):
        n_split = 1
    tiles_per_split = tiles_total // n_split
    any_partial = tiles_total * tile_rows != rows

    kernel = _make_sumsq_kernel(rows, tile_rows, tiles_per_split, acc_rows,
                                any_partial)

    # Explicit VMEM budget: double-buffered native block + headroom for the
    # f32 cast / square intermediates, capped below physical VMEM.
    block_native = tile_rows * _LANE * itemsize
    block_f32 = tile_rows * _LANE * 4
    vmem_limit = 2 * block_native + 4 * block_f32 + (2 << 20)
    cap = _vmem_capacity_bytes()
    vmem_limit = min(max(vmem_limit, 32 << 20), max(cap - (8 << 20), 32 << 20))

    cost = pl.CostEstimate(
        flops=2 * rows * _LANE,
        transcendentals=0,
        bytes_accessed=rows * _LANE * itemsize + n_split * acc_rows * _LANE * 4,
    )

    partials = pl.pallas_call(
        kernel,
        out_shape=jax.ShapeDtypeStruct((n_split, acc_rows, _LANE), jnp.float32),
        grid_spec=pltpu.PrefetchScalarGridSpec(
            num_scalar_prefetch=0,
            grid=(n_split, tiles_per_split),
            in_specs=[pl.BlockSpec((tile_rows, _LANE),
                                   lambda p, j: (p * tiles_per_split + j, 0))],
            out_specs=pl.BlockSpec((1, acc_rows, _LANE), lambda p, j: (p, 0, 0)),
            scratch_shapes=[pltpu.VMEM((acc_rows, _LANE), jnp.float32)],
        ),
        compiler_params=pltpu.CompilerParams(
            dimension_semantics=("parallel", "arbitrary"),
            vmem_limit_bytes=int(vmem_limit),
        ),
        cost_estimate=cost,
    )(x2d)

    # Single tiny cross-lane reduce (at most 2 x 64 x 128 values) outside.
    return jnp.sum(partials)


def emb_loss(*embeddings):
    """Pallas implementation of EmbLoss.forward (norm=2)."""
    total = jnp.zeros((), jnp.float32)
    for emb in embeddings:
        if emb.size < _SMALL_N:
            # Small tensor: a kernel launch would dwarf the work; let XLA fuse it.
            sumsq = jnp.sum(jnp.square(emb.astype(jnp.float32)))
        else:
            sumsq = _sumsq_pallas(emb)
        total = total + jnp.sqrt(sumsq)
    total = total / jnp.float32(embeddings[-1].shape[0])
    return total.reshape(1)  # shape (1,), matching the torch.zeros(1) accumulator


def emb_loss_ref(*embeddings):
    """Pure-JAX reference for validation."""
    total = jnp.zeros((), jnp.float32)
    for emb in embeddings:
        total = total + jnp.sqrt(jnp.sum(emb.astype(jnp.float32) ** 2))
    return (total / embeddings[-1].shape[0]).reshape(1)


if __name__ == "__main__":
    key = jax.random.PRNGKey(0)
    k1, k2, k3, k4, k5 = jax.random.split(key, 5)

    # (a) small conv-style feature map -> plain-XLA path
    emb_small = jax.random.normal(k1, (2, 4, 16, 16), dtype=jnp.float32)
    # (b) f32 map, rows a clean sublane multiple -> unmasked single-block path
    emb_f32 = jax.random.normal(k2, (2, 64, 64, 64), dtype=jnp.float32)
    # (c) rows not a multiple of 8 -> pl.when-gated tail-mask path
    emb_tail = jax.random.normal(k3, (4, 8, 92, 92), dtype=jnp.float32)
    # (d) bigger f32 map -> multi-block grid accumulation (and 2-way split on
    #     multi-TensorCore chips)
    emb_multi = jax.random.normal(k4, (4, 128, 64, 64), dtype=jnp.float32)
    # (e) bf16 map -> dtype-scaled rows + in-kernel f32 cast
    emb_bf16 = jax.random.normal(k5, (2, 64, 64, 64),
                                 dtype=jnp.float32).astype(jnp.bfloat16)

    run = jax.jit(emb_loss)

    out1 = jax.block_until_ready(run(emb_f32, emb_small))
    ref1 = emb_loss_ref(emb_f32, emb_small)
    assert out1.shape == (1,), out1.shape
    assert jnp.allclose(out1, ref1, rtol=1e-3, atol=1e-3), (out1, ref1)

    out2 = jax.block_until_ready(run(emb_tail, emb_multi, emb_bf16))
    ref2 = emb_loss_ref(emb_tail, emb_multi, emb_bf16)
    assert out2.shape == (1,), out2.shape
    assert jnp.allclose(out2, ref2, rtol=1e-3, atol=1e-3), (out2, ref2)

    print("KERNEL_OK")
</pallas_src>

<mosaic_0001>
module attributes {stable_mosaic.version = 11 : i64} {
  func.func @kernel(%arg0: i32, %arg1: i32, %arg2: memref<4096x128xf32, #tpu.memory_space<vmem>>, %arg3: memref<1x64x128xf32, #tpu.memory_space<vmem>>, %arg4: memref<64x128xf32, #tpu.memory_space<vmem>>) attributes {dimension_semantics = [#tpu.dimension_semantics<parallel>, #tpu.dimension_semantics<arbitrary>], iteration_bounds = array<i64: 1, 1>, scalar_prefetch = 0 : i64, scratch_operands = 1 : i64, tpu.core_type = #tpu.core_type<tc>, window_params = [{transform_indices = @transform_0, window_bounds = array<i64: 4096, 128>}, {transform_indices = @transform_1, window_bounds = array<i64: 1, 64, 128>}]} {
    %c0_i32 = arith.constant 0 : i32
    %0 = arith.cmpi eq, %arg1, %c0_i32 : i32
    %1 = arith.extui %0 : i1 to i32
    %c0_i32_0 = arith.constant 0 : i32
    %2 = arith.cmpi ne, %1, %c0_i32_0 : i32
    scf.if %2 {
      %cst_8 = arith.constant 0.000000e+00 : f32
      %13 = vector.broadcast %cst_8 : f32 to vector<64x128xf32>
      %c0_9 = arith.constant 0 : index
      %c0_10 = arith.constant 0 : index
      %14 = vector.load %arg4[%c0_9, %c0_10] : memref<64x128xf32, #tpu.memory_space<vmem>>, vector<64x128xf32>
      tpu.vector_store %arg4[%c0_9, %c0_10], %13 {strides = array<i32>} : memref<64x128xf32, #tpu.memory_space<vmem>>, vector<64x128xf32>,
    } else {
    }
    %c0 = arith.constant 0 : index
    %c0_1 = arith.constant 0 : index
    %3 = vector.load %arg2[%c0, %c0_1] : memref<4096x128xf32, #tpu.memory_space<vmem>>, vector<4096x128xf32>
    %4 = arith.mulf %3, %3 : vector<4096x128xf32>
    %c0_2 = arith.constant 0 : index
    %c0_3 = arith.constant 0 : index
    %5 = vector.load %arg4[%c0_2, %c0_3] : memref<64x128xf32, #tpu.memory_space<vmem>>, vector<64x128xf32>
    %6 = vector.shape_cast %4 : vector<4096x128xf32> to vector<64x64x128xf32>
    %cst = arith.constant dense<0.000000e+00> : vector<64x128xf32>
    %7 = vector.multi_reduction <add>, %6, %cst [0] : vector<64x64x128xf32> to vector<64x128xf32>
    %8 = arith.addf %5, %7 : vector<64x128xf32>
    %c0_4 = arith.constant 0 : index
    %c0_5 = arith.constant 0 : index
    %9 = vector.load %arg4[%c0_4, %c0_5] : memref<64x128xf32, #tpu.memory_space<vmem>>, vector<64x128xf32>
    tpu.vector_store %arg4[%c0_4, %c0_5], %8 {strides = array<i32>} : memref<64x128xf32, #tpu.memory_space<vmem>>, vector<64x128xf32>,
    %c0_i32_6 = arith.constant 0 : i32
    %10 = arith.cmpi eq, %arg1, %c0_i32_6 : i32
    %11 = arith.extui %10 : i1 to i32
    %c0_i32_7 = arith.constant 0 : i32
    %12 = arith.cmpi ne, %11, %c0_i32_7 : i32
    scf.if %12 {
      %c0_8 = arith.constant 0 : index
      %c0_9 = arith.constant 0 : index
      %13 = vector.load %arg4[%c0_8, %c0_9] : memref<64x128xf32, #tpu.memory_space<vmem>>, vector<64x128xf32>
      %c0_10 = arith.constant 0 : index
      %c0_11 = arith.constant 0 : index
      %c0_12 = arith.constant 0 : index
      %14 = vector.load %arg3[%c0_10, %c0_11, %c0_12] : memref<1x64x128xf32, #tpu.memory_space<vmem>>, vector<1x64x128xf32>
      %15 = vector.shape_cast %14 : vector<1x64x128xf32> to vector<64x128xf32>
      %16 = vector.shape_cast %13 : vector<64x128xf32> to vector<1x64x128xf32>
      tpu.vector_store %arg3[%c0_10, %c0_11, %c0_12], %16 {strides = array<i32>} : memref<1x64x128xf32, #tpu.memory_space<vmem>>, vector<1x64x128xf32>,
    } else {
    }
    return
  }
  func.func @transform_0(%arg0: i32, %arg1: i32) -> (i32, i32) {
    %c1_i32 = arith.constant 1 : i32
    %0 = arith.muli %arg0, %c1_i32 : i32
    %1 = arith.addi %0, %arg1 : i32
    %c0_i32 = arith.constant 0 : i32
    %c0_i32_0 = arith.constant 0 : i32
    return %1, %c0_i32 : i32, i32
  }
  func.func @transform_1(%arg0: i32, %arg1: i32) -> (i32, i32, i32) {
    %c0_i32 = arith.constant 0 : i32
    %c0_i32_0 = arith.constant 0 : i32
    %c0_i32_1 = arith.constant 0 : i32
    return %arg0, %c0_i32, %c0_i32_0 : i32, i32, i32
  }
}

</mosaic_0001>

<llo_original>
// kernel: emb_loss.1
$region0: #{emb_loss.1}
  #allocation0 [shape = 'u32[]', space=smem, size = 0x4, offset = 0x4, fixed_abs, tag = 'smem constant byte address 0x4 - core index']
  #allocation1 [shape = 'u32[144,128]{1,0:T(1,128)}', space=vmem, size = 0x12000, scoped, tag = 'internal scratch']
  #allocation2 [shape = 'f32[64,128]{1,0:T(8,128)}', space=vmem, size = 0x8000, scoped, tag = 'scratch operand']
  %s0 = inlined_call_operand.vmem [shape: f32[4096,128], index: 0, kind: input, shape index: {}]
  %s1 = inlined_call_operand.vmem [shape: f32[1,64,128], index: 1, kind: output, shape index: {}]
  %s2 = sld [smem:[#allocation0]]
  $region22: #{emb_loss.1} parent=0
    _
  %s4 = ssub.s32 1, %s2
  %s5 = scalar_select 0, %s4, %s2
  // Predicated region
  $region2: #{emb_loss.1} parent=0 // pred_check
    _
  $region3: #{emb_loss.1} parent=0 // pred_check_branch
    %7 = sbr.rel (0) target = $region5
  $region4: #{emb_loss.1} parent=0 // pred_region
    %s8 = sadd.s32 0, 0
    %s9 = smul.u32 512, %s8
    %p10 = scmp.lt.s32.totalorder %s9, 511
    %s11 = scalar_select %p10, %s9, 511
    %s12 = smul.addr %s11, 8
    %s13 = scalar_lea.vmem %s0, %s12
    %s14 = sadd.s32 0, 0
    %s15 = smul.u32 512, %s14
  $region5: #{emb_loss.1} parent=0 // pred_fallthru
    _
  %s16 = sadd.s32 0, 0
  %s17 = smul.u32 512, %s16
  %p18 = scmp.lt.s32.totalorder %s17, 511
  %s19 = scalar_select %p18, %s17, 511
  %s20 = smul.addr %s19, 8
  %s21 = scalar_lea.vmem %s0, %s20
  %s22 = sadd.s32 0, 0
  %s23 = smul.u32 512, %s22
  %p24 = scmp.lt.s32.totalorder %s23, 511
  %s25 = scalar_select %p24, %s23, 511
  %s26 = smul.addr %s25, 8
  %s27 = scalar_lea.vmem %s0, %s26
  %s28 = sadd.s32 0, 0
  %s29 = smul.u32 512, %s28
  %p30 = scmp.eq.s32.totalorder 0, 0
  // Predicated region
  $region6: #{emb_loss.1} parent=0 // pred_check
    %p31 = pneg %p30
  $region7: #{emb_loss.1} parent=0 // pred_check_branch
    %33 = sbr.rel (%p31) target = $region9
  $region8: #{emb_loss.1} parent=0 // pred_region
    %34 = vst [vmem:[#allocation2] sm:$0xff] 0.0
    %35 = vst [vmem:[#allocation2 + $0x8] sm:$0xff] 0.0
    %36 = vst [vmem:[#allocation2 + $0x10] sm:$0xff] 0.0
    %37 = vst [vmem:[#allocation2 + $0x18] sm:$0xff] 0.0
    %38 = vst [vmem:[#allocation2 + $0x20] sm:$0xff] 0.0
    %39 = vst [vmem:[#allocation2 + $0x28] sm:$0xff] 0.0
    %40 = vst [vmem:[#allocation2 + $0x30] sm:$0xff] 0.0
    %41 = vst [vmem:[#allocation2 + $0x38] sm:$0xff] 0.0
  $region9: #{emb_loss.1} parent=0 // pred_fallthru
    _
  %v42 = vld [vmem:[%s27] sm:$0xff]
  %v43 = vld [vmem:[%s27 + $0x8] sm:$0xff]
  %v44 = vld [vmem:[%s27 + $0x10] sm:$0xff]
  %v45 = vld [vmem:[%s27 + $0x18] sm:$0xff]
  %v46 = vld [vmem:[%s27 + $0x20] sm:$0xff]
  %v47 = vld [vmem:[%s27 + $0x28] sm:$0xff]
  %v48 = vld [vmem:[%s27 + $0x30] sm:$0xff]
  %v49 = vld [vmem:[%s27 + $0x38] sm:$0xff]
  %v50 = vld [vmem:[%s27 + $0x40] sm:$0xff]
  %v51 = vld [vmem:[%s27 + $0x48] sm:$0xff]
  %v52 = vld [vmem:[%s27 + $0x50] sm:$0xff]
  %v53 = vld [vmem:[%s27 + $0x58] sm:$0xff]
  %v54 = vld [vmem:[%s27 + $0x60] sm:$0xff]
  %v55 = vld [vmem:[%s27 + $0x68] sm:$0xff]
  %v56 = vld [vmem:[%s27 + $0x70] sm:$0xff]
  %v57 = vld [vmem:[%s27 + $0x78] sm:$0xff]
  %v58 = vld [vmem:[%s27 + $0x80] sm:$0xff]
  %v59 = vld [vmem:[%s27 + $0x88] sm:$0xff]
  %v60 = vld [vmem:[%s27 + $0x90] sm:$0xff]
  %v61 = vld [vmem:[%s27 + $0x98] sm:$0xff]
  %v62 = vld [vmem:[%s27 + $0xa0] sm:$0xff]
  %v63 = vld [vmem:[%s27 + $0xa8] sm:$0xff]
  %v64 = vld [vmem:[%s27 + $0xb0] sm:$0xff]
  %v65 = vld [vmem:[%s27 + $0xb8] sm:$0xff]
  %v66 = vld [vmem:[%s27 + $0xc0] sm:$0xff]
  %v67 = vld [vmem:[%s27 + $0xc8] sm:$0xff]
  %v68 = vld [vmem:[%s27 + $0xd0] sm:$0xff]
  %v69 = vld [vmem:[%s27 + $0xd8] sm:$0xff]
  %v70 = vld [vmem:[%s27 + $0xe0] sm:$0xff]
  %v71 = vld [vmem:[%s27 + $0xe8] sm:$0xff]
  %v72 = vld [vmem:[%s27 + $0xf0] sm:$0xff]
  %v73 = vld [vmem:[%s27 + $0xf8] sm:$0xff]
  %v74 = vld [vmem:[%s27 + $0x100] sm:$0xff]
  %v75 = vld [vmem:[%s27 + $0x108] sm:$0xff]
  %v76 = vld [vmem:[%s27 + $0x110] sm:$0xff]
  %v77 = vld [vmem:[%s27 + $0x118] sm:$0xff]
  %v78 = vld [vmem:[%s27 + $0x120] sm:$0xff]
  %v79 = vld [vmem:[%s27 + $0x128] sm:$0xff]
  %v80 = vld [vmem:[%s27 + $0x130] sm:$0xff]
  %v81 = vld [vmem:[%s27 + $0x138] sm:$0xff]
  %v82 = vld [vmem:[%s27 + $0x140] sm:$0xff]
  %v83 = vld [vmem:[%s27 + $0x148] sm:$0xff]
  %v84 = vld [vmem:[%s27 + $0x150] sm:$0xff]
  %v85 = vld [vmem:[%s27 + $0x158] sm:$0xff]
  %v86 = vld [vmem:[%s27 + $0x160] sm:$0xff]
  %v87 = vld [vmem:[%s27 + $0x168] sm:$0xff]
  %v88 = vld [vmem:[%s27 + $0x170] sm:$0xff]
  %v89 = vld [vmem:[%s27 + $0x178] sm:$0xff]
  %v90 = vld [vmem:[%s27 + $0x180] sm:$0xff]
  %v91 = vld [vmem:[%s27 + $0x188] sm:$0xff]
  %v92 = vld [vmem:[%s27 + $0x190] sm:$0xff]
  %v93 = vld [vmem:[%s27 + $0x198] sm:$0xff]
  %v94 = vld [vmem:[%s27 + $0x1a0] sm:$0xff]
  %v95 = vld [vmem:[%s27 + $0x1a8] sm:$0xff]
  %v96 = vld [vmem:[%s27 + $0x1b0] sm:$0xff]
  %v97 = vld [vmem:[%s27 + $0x1b8] sm:$0xff]
  %v98 = vld [vmem:[%s27 + $0x1c0] sm:$0xff]
  %v99 = vld [vmem:[%s27 + $0x1c8] sm:$0xff]
  %v100 = vld [vmem:[%s27 + $0x1d0] sm:$0xff]
  %v101 = vld [vmem:[%s27 + $0x1d8] sm:$0xff]
  %v102 = vld [vmem:[%s27 + $0x1e0] sm:$0xff]
  %v103 = vld [vmem:[%s27 + $0x1e8] sm:$0xff]
  %v104 = vld [vmem:[%s27 + $0x1f0] sm:$0xff]
  %v105 = vld [vmem:[%s27 + $0x1f8] sm:$0xff]
  %v106 = vld [vmem:[%s27 + $0x200] sm:$0xff]
  %v107 = vld [vmem:[%s27 + $0x208] sm:$0xff]
  %v108 = vld [vmem:[%s27 + $0x210] sm:$0xff]
  %v109 = vld [vmem:[%s27 + $0x218] sm:$0xff]
  %v110 = vld [vmem:[%s27 + $0x220] sm:$0xff]
  %v111 = vld [vmem:[%s27 + $0x228] sm:$0xff]
  %v112 = vld [vmem:[%s27 + $0x230] sm:$0xff]
  %v113 = vld [vmem:[%s27 + $0x238] sm:$0xff]
  %v114 = vld [vmem:[%s27 + $0x240] sm:$0xff]
  %v115 = vld [vmem:[%s27 + $0x248] sm:$0xff]
  %v116 = vld [vmem:[%s27 + $0x250] sm:$0xff]
  %v117 = vld [vmem:[%s27 + $0x258] sm:$0xff]
  %v118 = vld [vmem:[%s27 + $0x260] sm:$0xff]
  %v119 = vld [vmem:[%s27 + $0x268] sm:$0xff]
  %v120 = vld [vmem:[%s27 + $0x270] sm:$0xff]
  %v121 = vld [vmem:[%s27 + $0x278] sm:$0xff]
  %v122 = vld [vmem:[%s27 + $0x280] sm:$0xff]
  %v123 = vld [vmem:[%s27 + $0x288] sm:$0xff]
  %v124 = vld [vmem:[%s27 + $0x290] sm:$0xff]
  %v125 = vld [vmem:[%s27 + $0x298] sm:$0xff]
  %v126 = vld [vmem:[%s27 + $0x2a0] sm:$0xff]
  %v127 = vld [vmem:[%s27 + $0x2a8] sm:$0xff]
  %v128 = vld [vmem:[%s27 + $0x2b0] sm:$0xff]
  %v129 = vld [vmem:[%s27 + $0x2b8] sm:$0xff]
  %v130 = vld [vmem:[%s27 + $0x2c0] sm:$0xff]
  %v131 = vld [vmem:[%s27 + $0x2c8] sm:$0xff]
  %v132 = vld [vmem:[%s27 + $0x2d0] sm:$0xff]
  %v133 = vld [vmem:[%s27 + $0x2d8] sm:$0xff]
  %v134 = vld [vmem:[%s27 + $0x2e0] sm:$0xff]
  %v135 = vld [vmem:[%s27 + $0x2e8] sm:$0xff]
  %v136 = vld [vmem:[%s27 + $0x2f0] sm:$0xff]
  %v137 = vld [vmem:[%s27 + $0x2f8] sm:$0xff]
  %v138 = vld [vmem:[%s27 + $0x300] sm:$0xff]
  %v139 = vld [vmem:[%s27 + $0x308] sm:$0xff]
  %v140 = vld [vmem:[%s27 + $0x310] sm:$0xff]
  %v141 = vld [vmem:[%s27 + $0x318] sm:$0xff]
  %v142 = vld [vmem:[%s27 + $0x320] sm:$0xff]
  %v143 = vld [vmem:[%s27 + $0x328] sm:$0xff]
  %v144 = vld [vmem:[%s27 + $0x330] sm:$0xff]
  %v145 = vld [vmem:[%s27 + $0x338] sm:$0xff]
  %v146 = vld [vmem:[%s27 + $0x340] sm:$0xff]
  %v147 = vld [vmem:[%s27 + $0x348] sm:$0xff]
  %v148 = vld [vmem:[%s27 + $0x350] sm:$0xff]
  %v149 = vld [vmem:[%s27 + $0x358] sm:$0xff]
  %v150 = vld [vmem:[%s27 + $0x360] sm:$0xff]
  %v151 = vld [vmem:[%s27 + $0x368] sm:$0xff]
  %v152 = vld [vmem:[%s27 + $0x370] sm:$0xff]
  %v153 = vld [vmem:[%s27 + $0x378] sm:$0xff]
  %v154 = vld [vmem:[%s27 + $0x380] sm:$0xff]
  %v155 = vld [vmem:[%s27 + $0x388] sm:$0xff]
  %v156 = vld [vmem:[%s27 + $0x390] sm:$0xff]
  %v157 = vld [vmem:[%s27 + $0x398] sm:$0xff]
  %v158 = vld [vmem:[%s27 + $0x3a0] sm:$0xff]
  %v159 = vld [vmem:[%s27 + $0x3a8] sm:$0xff]
  %v160 = vld [vmem:[%s27 + $0x3b0] sm:$0xff]
  %v161 = vld [vmem:[%s27 + $0x3b8] sm:$0xff]
  %v162 = vld [vmem:[%s27 + $0x3c0] sm:$0xff]
  %v163 = vld [vmem:[%s27 + $0x3c8] sm:$0xff]
  %v164 = vld [vmem:[%s27 + $0x3d0] sm:$0xff]
  %v165 = vld [vmem:[%s27 + $0x3d8] sm:$0xff]
  %v166 = vld [vmem:[%s27 + $0x3e0] sm:$0xff]
  %v167 = vld [vmem:[%s27 + $0x3e8] sm:$0xff]
  %v168 = vld [vmem:[%s27 + $0x3f0] sm:$0xff]
  %v169 = vld [vmem:[%s27 + $0x3f8] sm:$0xff]
  %v170 = vld [vmem:[%s27 + $0x400] sm:$0xff]
  %v171 = vld [vmem:[%s27 + $0x408] sm:$0xff]
  %v172 = vld [vmem:[%s27 + $0x410] sm:$0xff]
  %v173 = vld [vmem:[%s27 + $0x418] sm:$0xff]
  %v174 = vld [vmem:[%s27 + $0x420] sm:$0xff]
  %v175 = vld [vmem:[%s27 + $0x428] sm:$0xff]
  %v176 = vld [vmem:[%s27 + $0x430] sm:$0xff]
  %v177 = vld [vmem:[%s27 + $0x438] sm:$0xff]
  %v178 = vld [vmem:[%s27 + $0x440] sm:$0xff]
  %v179 = vld [vmem:[%s27 + $0x448] sm:$0xff]
  %v180 = vld [vmem:[%s27 + $0x450] sm:$0xff]
  %v181 = vld [vmem:[%s27 + $0x458] sm:$0xff]
  %v182 = vld [vmem:[%s27 + $0x460] sm:$0xff]
  %v183 = vld [vmem:[%s27 + $0x468] sm:$0xff]
  %v184 = vld [vmem:[%s27 + $0x470] sm:$0xff]
  %v185 = vld [vmem:[%s27 + $0x478] sm:$0xff]
  %v186 = vld [vmem:[%s27 + $0x480] sm:$0xff]
  %v187 = vld [vmem:[%s27 + $0x488] sm:$0xff]
  %v188 = vld [vmem:[%s27 + $0x490] sm:$0xff]
  %v189 = vld [vmem:[%s27 + $0x498] sm:$0xff]
  %v190 = vld [vmem:[%s27 + $0x4a0] sm:$0xff]
  %v191 = vld [vmem:[%s27 + $0x4a8] sm:$0xff]
  %v192 = vld [vmem:[%s27 + $0x4b0] sm:$0xff]
  %v193 = vld [vmem:[%s27 + $0x4b8] sm:$0xff]
  %v194 = vld [vmem:[%s27 + $0x4c0] sm:$0xff]
  %v195 = vld [vmem:[%s27 + $0x4c8] sm:$0xff]
  %v196 = vld [vmem:[%s27 + $0x4d0] sm:$0xff]
  %v197 = vld [vmem:[%s27 + $0x4d8] sm:$0xff]
  %v198 = vld [vmem:[%s27 + $0x4e0] sm:$0xff]
  %v199 = vld [vmem:[%s27 + $0x4e8] sm:$0xff]
  %v200 = vld [vmem:[%s27 + $0x4f0] sm:$0xff]
  %v201 = vld [vmem:[%s27 + $0x4f8] sm:$0xff]
  %v202 = vld [vmem:[%s27 + $0x500] sm:$0xff]
  %v203 = vld [vmem:[%s27 + $0x508] sm:$0xff]
  %v204 = vld [vmem:[%s27 + $0x510] sm:$0xff]
  %v205 = vld [vmem:[%s27 + $0x518] sm:$0xff]
  %v206 = vld [vmem:[%s27 + $0x520] sm:$0xff]
  %v207 = vld [vmem:[%s27 + $0x528] sm:$0xff]
  %v208 = vld [vmem:[%s27 + $0x530] sm:$0xff]
  %v209 = vld [vmem:[%s27 + $0x538] sm:$0xff]
  %v210 = vld [vmem:[%s27 + $0x540] sm:$0xff]
  %v211 = vld [vmem:[%s27 + $0x548] sm:$0xff]
  %v212 = vld [vmem:[%s27 + $0x550] sm:$0xff]
  %v213 = vld [vmem:[%s27 + $0x558] sm:$0xff]
  %v214 = vld [vmem:[%s27 + $0x560] sm:$0xff]
  %v215 = vld [vmem:[%s27 + $0x568] sm:$0xff]
  %v216 = vld [vmem:[%s27 + $0x570] sm:$0xff]
  %v217 = vld [vmem:[%s27 + $0x578] sm:$0xff]
  %v218 = vld [vmem:[%s27 + $0x580] sm:$0xff]
  %v219 = vld [vmem:[%s27 + $0x588] sm:$0xff]
  %v220 = vld [vmem:[%s27 + $0x590] sm:$0xff]
  %v221 = vld [vmem:[%s27 + $0x598] sm:$0xff]
  %v222 = vld [vmem:[%s27 + $0x5a0] sm:$0xff]
  %v223 = vld [vmem:[%s27 + $0x5a8] sm:$0xff]
  %v224 = vld [vmem:[%s27 + $0x5b0] sm:$0xff]
  %v225 = vld [vmem:[%s27 + $0x5b8] sm:$0xff]
  %v226 = vld [vmem:[%s27 + $0x5c0] sm:$0xff]
  %v227 = vld [vmem:[%s27 + $0x5c8] sm:$0xff]
  %v228 = vld [vmem:[%s27 + $0x5d0] sm:$0xff]
  %v229 = vld [vmem:[%s27 + $0x5d8] sm:$0xff]
  %v230 = vld [vmem:[%s27 + $0x5e0] sm:$0xff]
  %v231 = vld [vmem:[%s27 + $0x5e8] sm:$0xff]
  %v232 = vld [vmem:[%s27 + $0x5f0] sm:$0xff]
  %v233 = vld [vmem:[%s27 + $0x5f8] sm:$0xff]
  %v234 = vld [vmem:[%s27 + $0x600] sm:$0xff]
  %v235 = vld [vmem:[%s27 + $0x608] sm:$0xff]
  %v236 = vld [vmem:[%s27 + $0x610] sm:$0xff]
  %v237 = vld [vmem:[%s27 + $0x618] sm:$0xff]
  %v238 = vld [vmem:[%s27 + $0x620] sm:$0xff]
  %v239 = vld [vmem:[%s27 + $0x628] sm:$0xff]
  %v240 = vld [vmem:[%s27 + $0x630] sm:$0xff]
  %v241 = vld [vmem:[%s27 + $0x638] sm:$0xff]
  %v242 = vld [vmem:[%s27 + $0x640] sm:$0xff]
  %v243 = vld [vmem:[%s27 + $0x648] sm:$0xff]
  %v244 = vld [vmem:[%s27 + $0x650] sm:$0xff]
  %v245 = vld [vmem:[%s27 + $0x658] sm:$0xff]
  %v246 = vld [vmem:[%s27 + $0x660] sm:$0xff]
  %v247 = vld [vmem:[%s27 + $0x668] sm:$0xff]
  %v248 = vld [vmem:[%s27 + $0x670] sm:$0xff]
  %v249 = vld [vmem:[%s27 + $0x678] sm:$0xff]
  %v250 = vld [vmem:[%s27 + $0x680] sm:$0xff]
  %v251 = vld [vmem:[%s27 + $0x688] sm:$0xff]
  %v252 = vld [vmem:[%s27 + $0x690] sm:$0xff]
  %v253 = vld [vmem:[%s27 + $0x698] sm:$0xff]
  %v254 = vld [vmem:[%s27 + $0x6a0] sm:$0xff]
  %v255 = vld [vmem:[%s27 + $0x6a8] sm:$0xff]
  %v256 = vld [vmem:[%s27 + $0x6b0] sm:$0xff]
  %v257 = vld [vmem:[%s27 + $0x6b8] sm:$0xff]
  %v258 = vld [vmem:[%s27 + $0x6c0] sm:$0xff]
  %v259 = vld [vmem:[%s27 + $0x6c8] sm:$0xff]
  %v260 = vld [vmem:[%s27 + $0x6d0] sm:$0xff]
  %v261 = vld [vmem:[%s27 + $0x6d8] sm:$0xff]
  %v262 = vld [vmem:[%s27 + $0x6e0] sm:$0xff]
  %v263 = vld [vmem:[%s27 + $0x6e8] sm:$0xff]
  %v264 = vld [vmem:[%s27 + $0x6f0] sm:$0xff]
  %v265 = vld [vmem:[%s27 + $0x6f8] sm:$0xff]
  %v266 = vld [vmem:[%s27 + $0x700] sm:$0xff]
  %v267 = vld [vmem:[%s27 + $0x708] sm:$0xff]
  %v268 = vld [vmem:[%s27 + $0x710] sm:$0xff]
  %v269 = vld [vmem:[%s27 + $0x718] sm:$0xff]
  %v270 = vld [vmem:[%s27 + $0x720] sm:$0xff]
  %v271 = vld [vmem:[%s27 + $0x728] sm:$0xff]
  %v272 = vld [vmem:[%s27 + $0x730] sm:$0xff]
  %v273 = vld [vmem:[%s27 + $0x738] sm:$0xff]
  %v274 = vld [vmem:[%s27 + $0x740] sm:$0xff]
  %v275 = vld [vmem:[%s27 + $0x748] sm:$0xff]
  %v276 = vld [vmem:[%s27 + $0x750] sm:$0xff]
  %v277 = vld [vmem:[%s27 + $0x758] sm:$0xff]
  %v278 = vld [vmem:[%s27 + $0x760] sm:$0xff]
  %v279 = vld [vmem:[%s27 + $0x768] sm:$0xff]
  %v280 = vld [vmem:[%s27 + $0x770] sm:$0xff]
  %v281 = vld [vmem:[%s27 + $0x778] sm:$0xff]
  %v282 = vld [vmem:[%s27 + $0x780] sm:$0xff]
  %v283 = vld [vmem:[%s27 + $0x788] sm:$0xff]
  %v284 = vld [vmem:[%s27 + $0x790] sm:$0xff]
  %v285 = vld [vmem:[%s27 + $0x798] sm:$0xff]
  %v286 = vld [vmem:[%s27 + $0x7a0] sm:$0xff]
  %v287 = vld [vmem:[%s27 + $0x7a8] sm:$0xff]
  %v288 = vld [vmem:[%s27 + $0x7b0] sm:$0xff]
  %v289 = vld [vmem:[%s27 + $0x7b8] sm:$0xff]
  %v290 = vld [vmem:[%s27 + $0x7c0] sm:$0xff]
  %v291 = vld [vmem:[%s27 + $0x7c8] sm:$0xff]
  %v292 = vld [vmem:[%s27 + $0x7d0] sm:$0xff]
  %v293 = vld [vmem:[%s27 + $0x7d8] sm:$0xff]
  %v294 = vld [vmem:[%s27 + $0x7e0] sm:$0xff]
  %v295 = vld [vmem:[%s27 + $0x7e8] sm:$0xff]
  %v296 = vld [vmem:[%s27 + $0x7f0] sm:$0xff]
  %v297 = vld [vmem:[%s27 + $0x7f8] sm:$0xff]
  %v298 = vld [vmem:[%s27 + $0x800] sm:$0xff]
  %v299 = vld [vmem:[%s27 + $0x808] sm:$0xff]
  %v300 = vld [vmem:[%s27 + $0x810] sm:$0xff]
  %v301 = vld [vmem:[%s27 + $0x818] sm:$0xff]
  %v302 = vld [vmem:[%s27 + $0x820] sm:$0xff]
  %v303 = vld [vmem:[%s27 + $0x828] sm:$0xff]
  %v304 = vld [vmem:[%s27 + $0x830] sm:$0xff]
  %v305 = vld [vmem:[%s27 + $0x838] sm:$0xff]
  %v306 = vld [vmem:[%s27 + $0x840] sm:$0xff]
  %v307 = vld [vmem:[%s27 + $0x848] sm:$0xff]
  %v308 = vld [vmem:[%s27 + $0x850] sm:$0xff]
  %v309 = vld [vmem:[%s27 + $0x858] sm:$0xff]
  %v310 = vld [vmem:[%s27 + $0x860] sm:$0xff]
  %v311 = vld [vmem:[%s27 + $0x868] sm:$0xff]
  %v312 = vld [vmem:[%s27 + $0x870] sm:$0xff]
  %v313 = vld [vmem:[%s27 + $0x878] sm:$0xff]
  %v314 = vld [vmem:[%s27 + $0x880] sm:$0xff]
  %v315 = vld [vmem:[%s27 + $0x888] sm:$0xff]
  %v316 = vld [vmem:[%s27 + $0x890] sm:$0xff]
  %v317 = vld [vmem:[%s27 + $0x898] sm:$0xff]
  %v318 = vld [vmem:[%s27 + $0x8a0] sm:$0xff]
  %v319 = vld [vmem:[%s27 + $0x8a8] sm:$0xff]
  %v320 = vld [vmem:[%s27 + $0x8b0] sm:$0xff]
  %v321 = vld [vmem:[%s27 + $0x8b8] sm:$0xff]
  %v322 = vld [vmem:[%s27 + $0x8c0] sm:$0xff]
  %v323 = vld [vmem:[%s27 + $0x8c8] sm:$0xff]
  %v324 = vld [vmem:[%s27 + $0x8d0] sm:$0xff]
  %v325 = vld [vmem:[%s27 + $0x8d8] sm:$0xff]
  %v326 = vld [vmem:[%s27 + $0x8e0] sm:$0xff]
  %v327 = vld [vmem:[%s27 + $0x8e8] sm:$0xff]
  %v328 = vld [vmem:[%s27 + $0x8f0] sm:$0xff]
  %v329 = vld [vmem:[%s27 + $0x8f8] sm:$0xff]
  %v330 = vld [vmem:[%s27 + $0x900] sm:$0xff]
  %v331 = vld [vmem:[%s27 + $0x908] sm:$0xff]
  %v332 = vld [vmem:[%s27 + $0x910] sm:$0xff]
  %v333 = vld [vmem:[%s27 + $0x918] sm:$0xff]
  %v334 = vld [vmem:[%s27 + $0x920] sm:$0xff]
  %v335 = vld [vmem:[%s27 + $0x928] sm:$0xff]
  %v336 = vld [vmem:[%s27 + $0x930] sm:$0xff]
  %v337 = vld [vmem:[%s27 + $0x938] sm:$0xff]
  %v338 = vld [vmem:[%s27 + $0x940] sm:$0xff]
  %v339 = vld [vmem:[%s27 + $0x948] sm:$0xff]
  %v340 = vld [vmem:[%s27 + $0x950] sm:$0xff]
  %v341 = vld [vmem:[%s27 + $0x958] sm:$0xff]
  %v342 = vld [vmem:[%s27 + $0x960] sm:$0xff]
  %v343 = vld [vmem:[%s27 + $0x968] sm:$0xff]
  %v344 = vld [vmem:[%s27 + $0x970] sm:$0xff]
  %v345 = vld [vmem:[%s27 + $0x978] sm:$0xff]
  %v346 = vld [vmem:[%s27 + $0x980] sm:$0xff]
  %v347 = vld [vmem:[%s27 + $0x988] sm:$0xff]
  %v348 = vld [vmem:[%s27 + $0x990] sm:$0xff]
  %v349 = vld [vmem:[%s27 + $0x998] sm:$0xff]
  %v350 = vld [vmem:[%s27 + $0x9a0] sm:$0xff]
  %v351 = vld [vmem:[%s27 + $0x9a8] sm:$0xff]
  %v352 = vld [vmem:[%s27 + $0x9b0] sm:$0xff]
  %v353 = vld [vmem:[%s27 + $0x9b8] sm:$0xff]
  %v354 = vld [vmem:[%s27 + $0x9c0] sm:$0xff]
  %v355 = vld [vmem:[%s27 + $0x9c8] sm:$0xff]
  %v356 = vld [vmem:[%s27 + $0x9d0] sm:$0xff]
  %v357 = vld [vmem:[%s27 + $0x9d8] sm:$0xff]
  %v358 = vld [vmem:[%s27 + $0x9e0] sm:$0xff]
  %v359 = vld [vmem:[%s27 + $0x9e8] sm:$0xff]
  %v360 = vld [vmem:[%s27 + $0x9f0] sm:$0xff]
  %v361 = vld [vmem:[%s27 + $0x9f8] sm:$0xff]
  %v362 = vld [vmem:[%s27 + $0xa00] sm:$0xff]
  %v363 = vld [vmem:[%s27 + $0xa08] sm:$0xff]
  %v364 = vld [vmem:[%s27 + $0xa10] sm:$0xff]
  %v365 = vld [vmem:[%s27 + $0xa18] sm:$0xff]
  %v366 = vld [vmem:[%s27 + $0xa20] sm:$0xff]
  %v367 = vld [vmem:[%s27 + $0xa28] sm:$0xff]
  %v368 = vld [vmem:[%s27 + $0xa30] sm:$0xff]
  %v369 = vld [vmem:[%s27 + $0xa38] sm:$0xff]
  %v370 = vld [vmem:[%s27 + $0xa40] sm:$0xff]
  %v371 = vld [vmem:[%s27 + $0xa48] sm:$0xff]
  %v372 = vld [vmem:[%s27 + $0xa50] sm:$0xff]
  %v373 = vld [vmem:[%s27 + $0xa58] sm:$0xff]
  %v374 = vld [vmem:[%s27 + $0xa60] sm:$0xff]
  %v375 = vld [vmem:[%s27 + $0xa68] sm:$0xff]
  %v376 = vld [vmem:[%s27 + $0xa70] sm:$0xff]
  %v377 = vld [vmem:[%s27 + $0xa78] sm:$0xff]
  %v378 = vld [vmem:[%s27 + $0xa80] sm:$0xff]
  %v379 = vld [vmem:[%s27 + $0xa88] sm:$0xff]
  %v380 = vld [vmem:[%s27 + $0xa90] sm:$0xff]
  %v381 = vld [vmem:[%s27 + $0xa98] sm:$0xff]
  %v382 = vld [vmem:[%s27 + $0xaa0] sm:$0xff]
  %v383 = vld [vmem:[%s27 + $0xaa8] sm:$0xff]
  %v384 = vld [vmem:[%s27 + $0xab0] sm:$0xff]
  %v385 = vld [vmem:[%s27 + $0xab8] sm:$0xff]
  %v386 = vld [vmem:[%s27 + $0xac0] sm:$0xff]
  %v387 = vld [vmem:[%s27 + $0xac8] sm:$0xff]
  %v388 = vld [vmem:[%s27 + $0xad0] sm:$0xff]
  %v389 = vld [vmem:[%s27 + $0xad8] sm:$0xff]
  %v390 = vld [vmem:[%s27 + $0xae0] sm:$0xff]
  %v391 = vld [vmem:[%s27 + $0xae8] sm:$0xff]
  %v392 = vld [vmem:[%s27 + $0xaf0] sm:$0xff]
  %v393 = vld [vmem:[%s27 + $0xaf8] sm:$0xff]
  %v394 = vld [vmem:[%s27 + $0xb00] sm:$0xff]
  %v395 = vld [vmem:[%s27 + $0xb08] sm:$0xff]
  %v396 = vld [vmem:[%s27 + $0xb10] sm:$0xff]
  %v397 = vld [vmem:[%s27 + $0xb18] sm:$0xff]
  %v398 = vld [vmem:[%s27 + $0xb20] sm:$0xff]
  %v399 = vld [vmem:[%s27 + $0xb28] sm:$0xff]
  %v400 = vld [vmem:[%s27 + $0xb30] sm:$0xff]
  %v401 = vld [vmem:[%s27 + $0xb38] sm:$0xff]
  %v402 = vld [vmem:[%s27 + $0xb40] sm:$0xff]
  %v403 = vld [vmem:[%s27 + $0xb48] sm:$0xff]
  %v404 = vld [vmem:[%s27 + $0xb50] sm:$0xff]
  %v405 = vld [vmem:[%s27 + $0xb58] sm:$0xff]
  %v406 = vld [vmem:[%s27 + $0xb60] sm:$0xff]
  %v407 = vld [vmem:[%s27 + $0xb68] sm:$0xff]
  %v408 = vld [vmem:[%s27 + $0xb70] sm:$0xff]
  %v409 = vld [vmem:[%s27 + $0xb78] sm:$0xff]
  %v410 = vld [vmem:[%s27 + $0xb80] sm:$0xff]
  %v411 = vld [vmem:[%s27 + $0xb88] sm:$0xff]
  %v412 = vld [vmem:[%s27 + $0xb90] sm:$0xff]
  %v413 = vld [vmem:[%s27 + $0xb98] sm:$0xff]
  %v414 = vld [vmem:[%s27 + $0xba0] sm:$0xff]
  %v415 = vld [vmem:[%s27 + $0xba8] sm:$0xff]
  %v416 = vld [vmem:[%s27 + $0xbb0] sm:$0xff]
  %v417 = vld [vmem:[%s27 + $0xbb8] sm:$0xff]
  %v418 = vld [vmem:[%s27 + $0xbc0] sm:$0xff]
  %v419 = vld [vmem:[%s27 + $0xbc8] sm:$0xff]
  %v420 = vld [vmem:[%s27 + $0xbd0] sm:$0xff]
  %v421 = vld [vmem:[%s27 + $0xbd8] sm:$0xff]
  %v422 = vld [vmem:[%s27 + $0xbe0] sm:$0xff]
  %v423 = vld [vmem:[%s27 + $0xbe8] sm:$0xff]
  %v424 = vld [vmem:[%s27 + $0xbf0] sm:$0xff]
  %v425 = vld [vmem:[%s27 + $0xbf8] sm:$0xff]
  %v426 = vld [vmem:[%s27 + $0xc00] sm:$0xff]
  %v427 = vld [vmem:[%s27 + $0xc08] sm:$0xff]
  %v428 = vld [vmem:[%s27 + $0xc10] sm:$0xff]
  %v429 = vld [vmem:[%s27 + $0xc18] sm:$0xff]
  %v430 = vld [vmem:[%s27 + $0xc20] sm:$0xff]
  %v431 = vld [vmem:[%s27 + $0xc28] sm:$0xff]
  %v432 = vld [vmem:[%s27 + $0xc30] sm:$0xff]
  %v433 = vld [vmem:[%s27 + $0xc38] sm:$0xff]
  %v434 = vld [vmem:[%s27 + $0xc40] sm:$0xff]
  %v435 = vld [vmem:[%s27 + $0xc48] sm:$0xff]
  %v436 = vld [vmem:[%s27 + $0xc50] sm:$0xff]
  %v437 = vld [vmem:[%s27 + $0xc58] sm:$0xff]
  %v438 = vld [vmem:[%s27 + $0xc60] sm:$0xff]
  %v439 = vld [vmem:[%s27 + $0xc68] sm:$0xff]
  %v440 = vld [vmem:[%s27 + $0xc70] sm:$0xff]
  %v441 = vld [vmem:[%s27 + $0xc78] sm:$0xff]
  %v442 = vld [vmem:[%s27 + $0xc80] sm:$0xff]
  %v443 = vld [vmem:[%s27 + $0xc88] sm:$0xff]
  %v444 = vld [vmem:[%s27 + $0xc90] sm:$0xff]
  %v445 = vld [vmem:[%s27 + $0xc98] sm:$0xff]
  %v446 = vld [vmem:[%s27 + $0xca0] sm:$0xff]
  %v447 = vld [vmem:[%s27 + $0xca8] sm:$0xff]
  %v448 = vld [vmem:[%s27 + $0xcb0] sm:$0xff]
  %v449 = vld [vmem:[%s27 + $0xcb8] sm:$0xff]
  %v450 = vld [vmem:[%s27 + $0xcc0] sm:$0xff]
  %v451 = vld [vmem:[%s27 + $0xcc8] sm:$0xff]
  %v452 = vld [vmem:[%s27 + $0xcd0] sm:$0xff]
  %v453 = vld [vmem:[%s27 + $0xcd8] sm:$0xff]
  %v454 = vld [vmem:[%s27 + $0xce0] sm:$0xff]
  %v455 = vld [vmem:[%s27 + $0xce8] sm:$0xff]
  %v456 = vld [vmem:[%s27 + $0xcf0] sm:$0xff]
  %v457 = vld [vmem:[%s27 + $0xcf8] sm:$0xff]
  %v458 = vld [vmem:[%s27 + $0xd00] sm:$0xff]
  %v459 = vld [vmem:[%s27 + $0xd08] sm:$0xff]
  %v460 = vld [vmem:[%s27 + $0xd10] sm:$0xff]
  %v461 = vld [vmem:[%s27 + $0xd18] sm:$0xff]
  %v462 = vld [vmem:[%s27 + $0xd20] sm:$0xff]
  %v463 = vld [vmem:[%s27 + $0xd28] sm:$0xff]
  %v464 = vld [vmem:[%s27 + $0xd30] sm:$0xff]
  %v465 = vld [vmem:[%s27 + $0xd38] sm:$0xff]
  %v466 = vld [vmem:[%s27 + $0xd40] sm:$0xff]
  %v467 = vld [vmem:[%s27 + $0xd48] sm:$0xff]
  %v468 = vld [vmem:[%s27 + $0xd50] sm:$0xff]
  %v469 = vld [vmem:[%s27 + $0xd58] sm:$0xff]
  %v470 = vld [vmem:[%s27 + $0xd60] sm:$0xff]
  %v471 = vld [vmem:[%s27 + $0xd68] sm:$0xff]
  %v472 = vld [vmem:[%s27 + $0xd70] sm:$0xff]
  %v473 = vld [vmem:[%s27 + $0xd78] sm:$0xff]
  %v474 = vld [vmem:[%s27 + $0xd80] sm:$0xff]
  %v475 = vld [vmem:[%s27 + $0xd88] sm:$0xff]
  %v476 = vld [vmem:[%s27 + $0xd90] sm:$0xff]
  %v477 = vld [vmem:[%s27 + $0xd98] sm:$0xff]
  %v478 = vld [vmem:[%s27 + $0xda0] sm:$0xff]
  %v479 = vld [vmem:[%s27 + $0xda8] sm:$0xff]
  %v480 = vld [vmem:[%s27 + $0xdb0] sm:$0xff]
  %v481 = vld [vmem:[%s27 + $0xdb8] sm:$0xff]
  %v482 = vld [vmem:[%s27 + $0xdc0] sm:$0xff]
  %v483 = vld [vmem:[%s27 + $0xdc8] sm:$0xff]
  %v484 = vld [vmem:[%s27 + $0xdd0] sm:$0xff]
  %v485 = vld [vmem:[%s27 + $0xdd8] sm:$0xff]
  %v486 = vld [vmem:[%s27 + $0xde0] sm:$0xff]
  %v487 = vld [vmem:[%s27 + $0xde8] sm:$0xff]
  %v488 = vld [vmem:[%s27 + $0xdf0] sm:$0xff]
  %v489 = vld [vmem:[%s27 + $0xdf8] sm:$0xff]
  %v490 = vld [vmem:[%s27 + $0xe00] sm:$0xff]
  %v491 = vld [vmem:[%s27 + $0xe08] sm:$0xff]
  %v492 = vld [vmem:[%s27 + $0xe10] sm:$0xff]
  %v493 = vld [vmem:[%s27 + $0xe18] sm:$0xff]
  %v494 = vld [vmem:[%s27 + $0xe20] sm:$0xff]
  %v495 = vld [vmem:[%s27 + $0xe28] sm:$0xff]
  %v496 = vld [vmem:[%s27 + $0xe30] sm:$0xff]
  %v497 = vld [vmem:[%s27 + $0xe38] sm:$0xff]
  %v498 = vld [vmem:[%s27 + $0xe40] sm:$0xff]
  %v499 = vld [vmem:[%s27 + $0xe48] sm:$0xff]
  %v500 = vld [vmem:[%s27 + $0xe50] sm:$0xff]
  %v501 = vld [vmem:[%s27 + $0xe58] sm:$0xff]
  %v502 = vld [vmem:[%s27 + $0xe60] sm:$0xff]
  %v503 = vld [vmem:[%s27 + $0xe68] sm:$0xff]
  %v504 = vld [vmem:[%s27 + $0xe70] sm:$0xff]
  %v505 = vld [vmem:[%s27 + $0xe78] sm:$0xff]
  %v506 = vld [vmem:[%s27 + $0xe80] sm:$0xff]
  %v507 = vld [vmem:[%s27 + $0xe88] sm:$0xff]
  %v508 = vld [vmem:[%s27 + $0xe90] sm:$0xff]
  %v509 = vld [vmem:[%s27 + $0xe98] sm:$0xff]
  %v510 = vld [vmem:[%s27 + $0xea0] sm:$0xff]
  %v511 = vld [vmem:[%s27 + $0xea8] sm:$0xff]
  %v512 = vld [vmem:[%s27 + $0xeb0] sm:$0xff]
  %v513 = vld [vmem:[%s27 + $0xeb8] sm:$0xff]
  %v514 = vld [vmem:[%s27 + $0xec0] sm:$0xff]
  %v515 = vld [vmem:[%s27 + $0xec8] sm:$0xff]
  %v516 = vld [vmem:[%s27 + $0xed0] sm:$0xff]
  %v517 = vld [vmem:[%s27 + $0xed8] sm:$0xff]
  %v518 = vld [vmem:[%s27 + $0xee0] sm:$0xff]
  %v519 = vld [vmem:[%s27 + $0xee8] sm:$0xff]
  %v520 = vld [vmem:[%s27 + $0xef0] sm:$0xff]
  %v521 = vld [vmem:[%s27 + $0xef8] sm:$0xff]
  %v522 = vld [vmem:[%s27 + $0xf00] sm:$0xff]
  %v523 = vld [vmem:[%s27 + $0xf08] sm:$0xff]
  %v524 = vld [vmem:[%s27 + $0xf10] sm:$0xff]
  %v525 = vld [vmem:[%s27 + $0xf18] sm:$0xff]
  %v526 = vld [vmem:[%s27 + $0xf20] sm:$0xff]
  %v527 = vld [vmem:[%s27 + $0xf28] sm:$0xff]
  %v528 = vld [vmem:[%s27 + $0xf30] sm:$0xff]
  %v529 = vld [vmem:[%s27 + $0xf38] sm:$0xff]
  %v530 = vld [vmem:[%s27 + $0xf40] sm:$0xff]
  %v531 = vld [vmem:[%s27 + $0xf48] sm:$0xff]
  %v532 = vld [vmem:[%s27 + $0xf50] sm:$0xff]
  %v533 = vld [vmem:[%s27 + $0xf58] sm:$0xff]
  %v534 = vld [vmem:[%s27 + $0xf60] sm:$0xff]
  %v535 = vld [vmem:[%s27 + $0xf68] sm:$0xff]
  %v536 = vld [vmem:[%s27 + $0xf70] sm:$0xff]
  %v537 = vld [vmem:[%s27 + $0xf78] sm:$0xff]
  %v538 = vld [vmem:[%s27 + $0xf80] sm:$0xff]
  %v539 = vld [vmem:[%s27 + $0xf88] sm:$0xff]
  %v540 = vld [vmem:[%s27 + $0xf90] sm:$0xff]
  %v541 = vld [vmem:[%s27 + $0xf98] sm:$0xff]
  %v542 = vld [vmem:[%s27 + $0xfa0] sm:$0xff]
  %v543 = vld [vmem:[%s27 + $0xfa8] sm:$0xff]
  %v544 = vld [vmem:[%s27 + $0xfb0] sm:$0xff]
  %v545 = vld [vmem:[%s27 + $0xfb8] sm:$0xff]
  %v546 = vld [vmem:[%s27 + $0xfc0] sm:$0xff]
  %v547 = vld [vmem:[%s27 + $0xfc8] sm:$0xff]
  %v548 = vld [vmem:[%s27 + $0xfd0] sm:$0xff]
  %v549 = vld [vmem:[%s27 + $0xfd8] sm:$0xff]
  %v550 = vld [vmem:[%s27 + $0xfe0] sm:$0xff]
  %v551 = vld [vmem:[%s27 + $0xfe8] sm:$0xff]
  %v552 = vld [vmem:[%s27 + $0xff0] sm:$0xff]
  %v553 = vld [vmem:[%s27 + $0xff8] sm:$0xff]
  %v554 = vmul.f32 %v42, %v42
  %v555 = vmul.f32 %v43, %v43
  %v556 = vmul.f32 %v44, %v44
  %v557 = vmul.f32 %v45, %v45
  %v558 = vmul.f32 %v46, %v46
  %v559 = vmul.f32 %v47, %v47
  %v560 = vmul.f32 %v48, %v48
  %v561 = vmul.f32 %v49, %v49
  %v562 = vmul.f32 %v50, %v50
  %v563 = vmul.f32 %v51, %v51
  %v564 = vmul.f32 %v52, %v52
  %v565 = vmul.f32 %v53, %v53
  %v566 = vmul.f32 %v54, %v54
  %v567 = vmul.f32 %v55, %v55
  %v568 = vmul.f32 %v56, %v56
  %v569 = vmul.f32 %v57, %v57
  %v570 = vmul.f32 %v58, %v58
  %v571 = vmul.f32 %v59, %v59
  %v572 = vmul.f32 %v60, %v60
  %v573 = vmul.f32 %v61, %v61
  %v574 = vmul.f32 %v62, %v62
  %v575 = vmul.f32 %v63, %v63
  %v576 = vmul.f32 %v64, %v64
  %v577 = vmul.f32 %v65, %v65
  %v578 = vmul.f32 %v66, %v66
  %v579 = vmul.f32 %v67, %v67
  %v580 = vmul.f32 %v68, %v68
  %v581 = vmul.f32 %v69, %v69
  %v582 = vmul.f32 %v70, %v70
  %v583 = vmul.f32 %v71, %v71
  %v584 = vmul.f32 %v72, %v72
  %v585 = vmul.f32 %v73, %v73
  %v586 = vmul.f32 %v74, %v74
  %v587 = vmul.f32 %v75, %v75
  %v588 = vmul.f32 %v76, %v76
  %v589 = vmul.f32 %v77, %v77
  %v590 = vmul.f32 %v78, %v78
  %v591 = vmul.f32 %v79, %v79
  %v592 = vmul.f32 %v80, %v80
  %v593 = vmul.f32 %v81, %v81
  %v594 = vmul.f32 %v82, %v82
  %v595 = vmul.f32 %v83, %v83
  %v596 = vmul.f32 %v84, %v84
  %v597 = vmul.f32 %v85, %v85
  %v598 = vmul.f32 %v86, %v86
  %v599 = vmul.f32 %v87, %v87
  %v600 = vmul.f32 %v88, %v88
  %v601 = vmul.f32 %v89, %v89
  %v602 = vmul.f32 %v90, %v90
  %v603 = vmul.f32 %v91, %v91
  %v604 = vmul.f32 %v92, %v92
  %v605 = vmul.f32 %v93, %v93
  %v606 = vmul.f32 %v94, %v94
  %v607 = vmul.f32 %v95, %v95
  %v608 = vmul.f32 %v96, %v96
  %v609 = vmul.f32 %v97, %v97
  %v610 = vmul.f32 %v98, %v98
  %v611 = vmul.f32 %v99, %v99
  %v612 = vmul.f32 %v100, %v100
  %v613 = vmul.f32 %v101, %v101
  %v614 = vmul.f32 %v102, %v102
  %v615 = vmul.f32 %v103, %v103
  %v616 = vmul.f32 %v104, %v104
  %v617 = vmul.f32 %v105, %v105
  %v618 = vmul.f32 %v106, %v106
  %v619 = vmul.f32 %v107, %v107
  %v620 = vmul.f32 %v108, %v108
  %v621 = vmul.f32 %v109, %v109
  %v622 = vmul.f32 %v110, %v110
  %v623 = vmul.f32 %v111, %v111
  %v624 = vmul.f32 %v112, %v112
  %v625 = vmul.f32 %v113, %v113
  %v626 = vmul.f32 %v114, %v114
  %v627 = vmul.f32 %v115, %v115
  %v628 = vmul.f32 %v116, %v116
  %v629 = vmul.f32 %v117, %v117
  %v630 = vmul.f32 %v118, %v118
  %v631 = vmul.f32 %v119, %v119
  %v632 = vmul.f32 %v120, %v120
  %v633 = vmul.f32 %v121, %v121
  %v634 = vmul.f32 %v122, %v122
  %v635 = vmul.f32 %v123, %v123
  %v636 = vmul.f32 %v124, %v124
  %v637 = vmul.f32 %v125, %v125
  %v638 = vmul.f32 %v126, %v126
  %v639 = vmul.f32 %v127, %v127
  %v640 = vmul.f32 %v128, %v128
  %v641 = vmul.f32 %v129, %v129
  %v642 = vmul.f32 %v130, %v130
  %v643 = vmul.f32 %v131, %v131
  %v644 = vmul.f32 %v132, %v132
  %v645 = vmul.f32 %v133, %v133
  %v646 = vmul.f32 %v134, %v134
  %v647 = vmul.f32 %v135, %v135
  %v648 = vmul.f32 %v136, %v136
  %v649 = vmul.f32 %v137, %v137
  %v650 = vmul.f32 %v138, %v138
  %v651 = vmul.f32 %v139, %v139
  %v652 = vmul.f32 %v140, %v140
  %v653 = vmul.f32 %v141, %v141
  %v654 = vmul.f32 %v142, %v142
  %v655 = vmul.f32 %v143, %v143
  %v656 = vmul.f32 %v144, %v144
  %v657 = vmul.f32 %v145, %v145
  %v658 = vmul.f32 %v146, %v146
  %v659 = vmul.f32 %v147, %v147
  %v660 = vmul.f32 %v148, %v148
  %v661 = vmul.f32 %v149, %v149
  %v662 = vmul.f32 %v150, %v150
  %v663 = vmul.f32 %v151, %v151
  %v664 = vmul.f32 %v152, %v152
  %v665 = vmul.f32 %v153, %v153
  %v666 = vmul.f32 %v154, %v154
  %v667 = vmul.f32 %v155, %v155
  %v668 = vmul.f32 %v156, %v156
  %v669 = vmul.f32 %v157, %v157
  %v670 = vmul.f32 %v158, %v158
  %v671 = vmul.f32 %v159, %v159
  %v672 = vmul.f32 %v160, %v160
  %v673 = vmul.f32 %v161, %v161
  %v674 = vmul.f32 %v162, %v162
  %v675 = vmul.f32 %v163, %v163
  %v676 = vmul.f32 %v164, %v164
  %v677 = vmul.f32 %v165, %v165
  %v678 = vmul.f32 %v166, %v166
  %v679 = vmul.f32 %v167, %v167
  %v680 = vmul.f32 %v168, %v168
  %v681 = vmul.f32 %v169, %v169
  %v682 = vmul.f32 %v170, %v170
  %v683 = vmul.f32 %v171, %v171
  %v684 = vmul.f32 %v172, %v172
  %v685 = vmul.f32 %v173, %v173
  %v686 = vmul.f32 %v174, %v174
  %v687 = vmul.f32 %v175, %v175
  %v688 = vmul.f32 %v176, %v176
  %v689 = vmul.f32 %v177, %v177
  %v690 = vmul.f32 %v178, %v178
  %v691 = vmul.f32 %v179, %v179
  %v692 = vmul.f32 %v180, %v180
  %v693 = vmul.f32 %v181, %v181
  %v694 = vmul.f32 %v182, %v182
  %v695 = vmul.f32 %v183, %v183
  %v696 = vmul.f32 %v184, %v184
  %v697 = vmul.f32 %v185, %v185
  %v698 = vmul.f32 %v186, %v186
  %v699 = vmul.f32 %v187, %v187
  %v700 = vmul.f32 %v188, %v188
  %v701 = vmul.f32 %v189, %v189
  %v702 = vmul.f32 %v190, %v190
  %v703 = vmul.f32 %v191, %v191
  %v704 = vmul.f32 %v192, %v192
  %v705 = vmul.f32 %v193, %v193
  %v706 = vmul.f32 %v194, %v194
  %v707 = vmul.f32 %v195, %v195
  %v708 = vmul.f32 %v196, %v196
  %v709 = vmul.f32 %v197, %v197
  %v710 = vmul.f32 %v198, %v198
  %v711 = vmul.f32 %v199, %v199
  %v712 = vmul.f32 %v200, %v200
  %v713 = vmul.f32 %v201, %v201
  %v714 = vmul.f32 %v202, %v202
  %v715 = vmul.f32 %v203, %v203
  %v716 = vmul.f32 %v204, %v204
  %v717 = vmul.f32 %v205, %v205
  %v718 = vmul.f32 %v206, %v206
  %v719 = vmul.f32 %v207, %v207
  %v720 = vmul.f32 %v208, %v208
  %v721 = vmul.f32 %v209, %v209
  %v722 = vmul.f32 %v210, %v210
  %v723 = vmul.f32 %v211, %v211
  %v724 = vmul.f32 %v212, %v212
  %v725 = vmul.f32 %v213, %v213
  %v726 = vmul.f32 %v214, %v214
  %v727 = vmul.f32 %v215, %v215
  %v728 = vmul.f32 %v216, %v216
  %v729 = vmul.f32 %v217, %v217
  %v730 = vmul.f32 %v218, %v218
  %v731 = vmul.f32 %v219, %v219
  %v732 = vmul.f32 %v220, %v220
  %v733 = vmul.f32 %v221, %v221
  %v734 = vmul.f32 %v222, %v222
  %v735 = vmul.f32 %v223, %v223
  %v736 = vmul.f32 %v224, %v224
  %v737 = vmul.f32 %v225, %v225
  %v738 = vmul.f32 %v226, %v226
  %v739 = vmul.f32 %v227, %v227
  %v740 = vmul.f32 %v228, %v228
  %v741 = vmul.f32 %v229, %v229
  %v742 = vmul.f32 %v230, %v230
  %v743 = vmul.f32 %v231, %v231
  %v744 = vmul.f32 %v232, %v232
  %v745 = vmul.f32 %v233, %v233
  %v746 = vmul.f32 %v234, %v234
  %v747 = vmul.f32 %v235, %v235
  %v748 = vmul.f32 %v236, %v236
  %v749 = vmul.f32 %v237, %v237
  %v750 = vmul.f32 %v238, %v238
  %v751 = vmul.f32 %v239, %v239
  %v752 = vmul.f32 %v240, %v240
  %v753 = vmul.f32 %v241, %v241
  %v754 = vmul.f32 %v242, %v242
  %v755 = vmul.f32 %v243, %v243
  %v756 = vmul.f32 %v244, %v244
  %v757 = vmul.f32 %v245, %v245
  %v758 = vmul.f32 %v246, %v246
  %v759 = vmul.f32 %v247, %v247
  %v760 = vmul.f32 %v248, %v248
  %v761 = vmul.f32 %v249, %v249
  %v762 = vmul.f32 %v250, %v250
  %v763 = vmul.f32 %v251, %v251
  %v764 = vmul.f32 %v252, %v252
  %v765 = vmul.f32 %v253, %v253
  %v766 = vmul.f32 %v254, %v254
  %v767 = vmul.f32 %v255, %v255
  %v768 = vmul.f32 %v256, %v256
  %v769 = vmul.f32 %v257, %v257
  %v770 = vmul.f32 %v258, %v258
  %v771 = vmul.f32 %v259, %v259
  %v772 = vmul.f32 %v260, %v260
  %v773 = vmul.f32 %v261, %v261
  %v774 = vmul.f32 %v262, %v262
  %v775 = vmul.f32 %v263, %v263
  %v776 = vmul.f32 %v264, %v264
  %v777 = vmul.f32 %v265, %v265
  %v778 = vmul.f32 %v266, %v266
  %v779 = vmul.f32 %v267, %v267
  %v780 = vmul.f32 %v268, %v268
  %v781 = vmul.f32 %v269, %v269
  %v782 = vmul.f32 %v270, %v270
  %v783 = vmul.f32 %v271, %v271
  %v784 = vmul.f32 %v272, %v272
  %v785 = vmul.f32 %v273, %v273
  %v786 = vmul.f32 %v274, %v274
  %v787 = vmul.f32 %v275, %v275
  %v788 = vmul.f32 %v276, %v276
  %v789 = vmul.f32 %v277, %v277
  %v790 = vmul.f32 %v278, %v278
  %v791 = vmul.f32 %v279, %v279
  %v792 = vmul.f32 %v280, %v280
  %v793 = vmul.f32 %v281, %v281
  %v794 = vmul.f32 %v282, %v282
  %v795 = vmul.f32 %v283, %v283
  %v796 = vmul.f32 %v284, %v284
  %v797 = vmul.f32 %v285, %v285
  %v798 = vmul.f32 %v286, %v286
  %v799 = vmul.f32 %v287, %v287
  %v800 = vmul.f32 %v288, %v288
  %v801 = vmul.f32 %v289, %v289
  %v802 = vmul.f32 %v290, %v290
  %v803 = vmul.f32 %v291, %v291
  %v804 = vmul.f32 %v292, %v292
  %v805 = vmul.f32 %v293, %v293
  %v806 = vmul.f32 %v294, %v294
  %v807 = vmul.f32 %v295, %v295
  %v808 = vmul.f32 %v296, %v296
  %v809 = vmul.f32 %v297, %v297
  %v810 = vmul.f32 %v298, %v298
  %v811 = vmul.f32 %v299, %v299
  %v812 = vmul.f32 %v300, %v300
  %v813 = vmul.f32 %v301, %v301
  %v814 = vmul.f32 %v302, %v302
  %v815 = vmul.f32 %v303, %v303
  %v816 = vmul.f32 %v304, %v304
  %v817 = vmul.f32 %v305, %v305
  %v818 = vmul.f32 %v306, %v306
  %v819 = vmul.f32 %v307, %v307
  %v820 = vmul.f32 %v308, %v308
  %v821 = vmul.f32 %v309, %v309
  %v822 = vmul.f32 %v310, %v310
  %v823 = vmul.f32 %v311, %v311
  %v824 = vmul.f32 %v312, %v312
  %v825 = vmul.f32 %v313, %v313
  %v826 = vmul.f32 %v314, %v314
  %v827 = vmul.f32 %v315, %v315
  %v828 = vmul.f32 %v316, %v316
  %v829 = vmul.f32 %v317, %v317
  %v830 = vmul.f32 %v318, %v318
  %v831 = vmul.f32 %v319, %v319
  %v832 = vmul.f32 %v320, %v320
  %v833 = vmul.f32 %v321, %v321
  %v834 = vmul.f32 %v322, %v322
  %v835 = vmul.f32 %v323, %v323
  %v836 = vmul.f32 %v324, %v324
  %v837 = vmul.f32 %v325, %v325
  %v838 = vmul.f32 %v326, %v326
  %v839 = vmul.f32 %v327, %v327
  %v840 = vmul.f32 %v328, %v328
  %v841 = vmul.f32 %v329, %v329
  %v842 = vmul.f32 %v330, %v330
  %v843 = vmul.f32 %v331, %v331
  %v844 = vmul.f32 %v332, %v332
  %v845 = vmul.f32 %v333, %v333
  %v846 = vmul.f32 %v334, %v334
  %v847 = vmul.f32 %v335, %v335
  %v848 = vmul.f32 %v336, %v336
  %v849 = vmul.f32 %v337, %v337
  %v850 = vmul.f32 %v338, %v338
  %v851 = vmul.f32 %v339, %v339
  %v852 = vmul.f32 %v340, %v340
  %v853 = vmul.f32 %v341, %v341
  %v854 = vmul.f32 %v342, %v342
  %v855 = vmul.f32 %v343, %v343
  %v856 = vmul.f32 %v344, %v344
  %v857 = vmul.f32 %v345, %v345
  %v858 = vmul.f32 %v346, %v346
  %v859 = vmul.f32 %v347, %v347
  %v860 = vmul.f32 %v348, %v348
  %v861 = vmul.f32 %v349, %v349
  %v862 = vmul.f32 %v350, %v350
  %v863 = vmul.f32 %v351, %v351
  %v864 = vmul.f32 %v352, %v352
  %v865 = vmul.f32 %v353, %v353
  %v866 = vmul.f32 %v354, %v354
  %v867 = vmul.f32 %v355, %v355
  %v868 = vmul.f32 %v356, %v356
  %v869 = vmul.f32 %v357, %v357
  %v870 = vmul.f32 %v358, %v358
  %v871 = vmul.f32 %v359, %v359
  %v872 = vmul.f32 %v360, %v360
  %v873 = vmul.f32 %v361, %v361
  %v874 = vmul.f32 %v362, %v362
  %v875 = vmul.f32 %v363, %v363
  %v876 = vmul.f32 %v364, %v364
  %v877 = vmul.f32 %v365, %v365
  %v878 = vmul.f32 %v366, %v366
  %v879 = vmul.f32 %v367, %v367
  %v880 = vmul.f32 %v368, %v368
  %v881 = vmul.f32 %v369, %v369
  %v882 = vmul.f32 %v370, %v370
  %v883 = vmul.f32 %v371, %v371
  %v884 = vmul.f32 %v372, %v372
  %v885 = vmul.f32 %v373, %v373
  %v886 = vmul.f32 %v374, %v374
  %v887 = vmul.f32 %v375, %v375
  %v888 = vmul.f32 %v376, %v376
  %v889 = vmul.f32 %v377, %v377
  %v890 = vmul.f32 %v378, %v378
  %v891 = vmul.f32 %v379, %v379
  %v892 = vmul.f32 %v380, %v380
  %v893 = vmul.f32 %v381, %v381
  %v894 = vmul.f32 %v382, %v382
  %v895 = vmul.f32 %v383, %v383
  %v896 = vmul.f32 %v384, %v384
  %v897 = vmul.f32 %v385, %v385
  %v898 = vmul.f32 %v386, %v386
  %v899 = vmul.f32 %v387, %v387
  %v900 = vmul.f32 %v388, %v388
  %v901 = vmul.f32 %v389, %v389
  %v902 = vmul.f32 %v390, %v390
  %v903 = vmul.f32 %v391, %v391
  %v904 = vmul.f32 %v392, %v392
  %v905 = vmul.f32 %v393, %v393
  %v906 = vmul.f32 %v394, %v394
  %v907 = vmul.f32 %v395, %v395
  %v908 = vmul.f32 %v396, %v396
  %v909 = vmul.f32 %v397, %v397
  %v910 = vmul.f32 %v398, %v398
  %v911 = vmul.f32 %v399, %v399
  %v912 = vmul.f32 %v400, %v400
  %v913 = vmul.f32 %v401, %v401
  %v914 = vmul.f32 %v402, %v402
  %v915 = vmul.f32 %v403, %v403
  %v916 = vmul.f32 %v404, %v404
  %v917 = vmul.f32 %v405, %v405
  %v918 = vmul.f32 %v406, %v406
  %v919 = vmul.f32 %v407, %v407
  %v920 = vmul.f32 %v408, %v408
  %v921 = vmul.f32 %v409, %v409
  %v922 = vmul.f32 %v410, %v410
  %v923 = vmul.f32 %v411, %v411
  %v924 = vmul.f32 %v412, %v412
  %v925 = vmul.f32 %v413, %v413
  %v926 = vmul.f32 %v414, %v414
  %v927 = vmul.f32 %v415, %v415
  %v928 = vmul.f32 %v416, %v416
  %v929 = vmul.f32 %v417, %v417
  %v930 = vmul.f32 %v418, %v418
  %v931 = vmul.f32 %v419, %v419
  %v932 = vmul.f32 %v420, %v420
  %v933 = vmul.f32 %v421, %v421
  %v934 = vmul.f32 %v422, %v422
  %v935 = vmul.f32 %v423, %v423
  %v936 = vmul.f32 %v424, %v424
  %v937 = vmul.f32 %v425, %v425
  %v938 = vmul.f32 %v426, %v426
  %v939 = vmul.f32 %v427, %v427
  %v940 = vmul.f32 %v428, %v428
  %v941 = vmul.f32 %v429, %v429
  %v942 = vmul.f32 %v430, %v430
  %v943 = vmul.f32 %v431, %v431
  %v944 = vmul.f32 %v432, %v432
  %v945 = vmul.f32 %v433, %v433
  %v946 = vmul.f32 %v434, %v434
  %v947 = vmul.f32 %v435, %v435
  %v948 = vmul.f32 %v436, %v436
  %v949 = vmul.f32 %v437, %v437
  %v950 = vmul.f32 %v438, %v438
  %v951 = vmul.f32 %v439, %v439
  %v952 = vmul.f32 %v440, %v440
  %v953 = vmul.f32 %v441, %v441
  %v954 = vmul.f32 %v442, %v442
  %v955 = vmul.f32 %v443, %v443
  %v956 = vmul.f32 %v444, %v444
  %v957 = vmul.f32 %v445, %v445
  %v958 = vmul.f32 %v446, %v446
  %v959 = vmul.f32 %v447, %v447
  %v960 = vmul.f32 %v448, %v448
  %v961 = vmul.f32 %v449, %v449
  %v962 = vmul.f32 %v450, %v450
  %v963 = vmul.f32 %v451, %v451
  %v964 = vmul.f32 %v452, %v452
  %v965 = vmul.f32 %v453, %v453
  %v966 = vmul.f32 %v454, %v454
  %v967 = vmul.f32 %v455, %v455
  %v968 = vmul.f32 %v456, %v456
  %v969 = vmul.f32 %v457, %v457
  %v970 = vmul.f32 %v458, %v458
  %v971 = vmul.f32 %v459, %v459
  %v972 = vmul.f32 %v460, %v460
  %v973 = vmul.f32 %v461, %v461
  %v974 = vmul.f32 %v462, %v462
  %v975 = vmul.f32 %v463, %v463
  %v976 = vmul.f32 %v464, %v464
  %v977 = vmul.f32 %v465, %v465
  %v978 = vmul.f32 %v466, %v466
  %v979 = vmul.f32 %v467, %v467
  %v980 = vmul.f32 %v468, %v468
  %v981 = vmul.f32 %v469, %v469
  %v982 = vmul.f32 %v470, %v470
  %v983 = vmul.f32 %v471, %v471
  %v984 = vmul.f32 %v472, %v472
  %v985 = vmul.f32 %v473, %v473
  %v986 = vmul.f32 %v474, %v474
  %v987 = vmul.f32 %v475, %v475
  %v988 = vmul.f32 %v476, %v476
  %v989 = vmul.f32 %v477, %v477
  %v990 = vmul.f32 %v478, %v478
  %v991 = vmul.f32 %v479, %v479
  %v992 = vmul.f32 %v480, %v480
  %v993 = vmul.f32 %v481, %v481
  %v994 = vmul.f32 %v482, %v482
  %v995 = vmul.f32 %v483, %v483
  %v996 = vmul.f32 %v484, %v484
  %v997 = vmul.f32 %v485, %v485
  %v998 = vmul.f32 %v486, %v486
  %v999 = vmul.f32 %v487, %v487
  %v1000 = vmul.f32 %v488, %v488
  %v1001 = vmul.f32 %v489, %v489
  %v1002 = vmul.f32 %v490, %v490
  %v1003 = vmul.f32 %v491, %v491
  %v1004 = vmul.f32 %v492, %v492
  %v1005 = vmul.f32 %v493, %v493
  %v1006 = vmul.f32 %v494, %v494
  %v1007 = vmul.f32 %v495, %v495
  %v1008 = vmul.f32 %v496, %v496
  %v1009 = vmul.f32 %v497, %v497
  %v1010 = vmul.f32 %v498, %v498
  %v1011 = vmul.f32 %v499, %v499
  %v1012 = vmul.f32 %v500, %v500
  %v1013 = vmul.f32 %v501, %v501
  %v1014 = vmul.f32 %v502, %v502
  %v1015 = vmul.f32 %v503, %v503
  %v1016 = vmul.f32 %v504, %v504
  %v1017 = vmul.f32 %v505, %v505
  %v1018 = vmul.f32 %v506, %v506
  %v1019 = vmul.f32 %v507, %v507
  %v1020 = vmul.f32 %v508, %v508
  %v1021 = vmul.f32 %v509, %v509
  %v1022 = vmul.f32 %v510, %v510
  %v1023 = vmul.f32 %v511, %v511
  %v1024 = vmul.f32 %v512, %v512
  %v1025 = vmul.f32 %v513, %v513
  %v1026 = vmul.f32 %v514, %v514
  %v1027 = vmul.f32 %v515, %v515
  %v1028 = vmul.f32 %v516, %v516
  %v1029 = vmul.f32 %v517, %v517
  %v1030 = vmul.f32 %v518, %v518
  %v1031 = vmul.f32 %v519, %v519
  %v1032 = vmul.f32 %v520, %v520
  %v1033 = vmul.f32 %v521, %v521
  %v1034 = vmul.f32 %v522, %v522
  %v1035 = vmul.f32 %v523, %v523
  %v1036 = vmul.f32 %v524, %v524
  %v1037 = vmul.f32 %v525, %v525
  %v1038 = vmul.f32 %v526, %v526
  %v1039 = vmul.f32 %v527, %v527
  %v1040 = vmul.f32 %v528, %v528
  %v1041 = vmul.f32 %v529, %v529
  %v1042 = vmul.f32 %v530, %v530
  %v1043 = vmul.f32 %v531, %v531
  %v1044 = vmul.f32 %v532, %v532
  %v1045 = vmul.f32 %v533, %v533
  %v1046 = vmul.f32 %v534, %v534
  %v1047 = vmul.f32 %v535, %v535
  %v1048 = vmul.f32 %v536, %v536
  %v1049 = vmul.f32 %v537, %v537
  %v1050 = vmul.f32 %v538, %v538
  %v1051 = vmul.f32 %v539, %v539
  %v1052 = vmul.f32 %v540, %v540
  %v1053 = vmul.f32 %v541, %v541
  %v1054 = vmul.f32 %v542, %v542
  %v1055 = vmul.f32 %v543, %v543
  %v1056 = vmul.f32 %v544, %v544
  %v1057 = vmul.f32 %v545, %v545
  %v1058 = vmul.f32 %v546, %v546
  %v1059 = vmul.f32 %v547, %v547
  %v1060 = vmul.f32 %v548, %v548
  %v1061 = vmul.f32 %v549, %v549
  %v1062 = vmul.f32 %v550, %v550
  %v1063 = vmul.f32 %v551, %v551
  %v1064 = vmul.f32 %v552, %v552
  %v1065 = vmul.f32 %v553, %v553
  %v1066 = vld [vmem:[#allocation2] sm:$0xff]
  %v1067 = vld [vmem:[#allocation2 + $0x8] sm:$0xff]
  %v1068 = vld [vmem:[#allocation2 + $0x10] sm:$0xff]
  %v1069 = vld [vmem:[#allocation2 + $0x18] sm:$0xff]
  %v1070 = vld [vmem:[#allocation2 + $0x20] sm:$0xff]
  %v1071 = vld [vmem:[#allocation2 + $0x28] sm:$0xff]
  %v1072 = vld [vmem:[#allocation2 + $0x30] sm:$0xff]
  %v1073 = vld [vmem:[#allocation2 + $0x38] sm:$0xff]
  %v1074 = vadd.f32 %v554, %v562
  %v1075 = vadd.f32 %v1074, %v570
  %v1076 = vadd.f32 %v1075, %v578
  %v1077 = vadd.f32 %v1076, %v586
  %v1078 = vadd.f32 %v1077, %v594
  %v1079 = vadd.f32 %v1078, %v602
  %v1080 = vadd.f32 %v1079, %v610
  %v1081 = vadd.f32 %v1080, %v618
  %v1082 = vadd.f32 %v1081, %v626
  %v1083 = vadd.f32 %v1082, %v634
  %v1084 = vadd.f32 %v1083, %v642
  %v1085 = vadd.f32 %v1084, %v650
  %v1086 = vadd.f32 %v1085, %v658
  %v1087 = vadd.f32 %v1086, %v666
  %v1088 = vadd.f32 %v1087, %v674
  %v1089 = vadd.f32 %v1088, %v682
  %v1090 = vadd.f32 %v1089, %v690
  %v1091 = vadd.f32 %v1090, %v698
  %v1092 = vadd.f32 %v1091, %v706
  %v1093 = vadd.f32 %v1092, %v714
  %v1094 = vadd.f32 %v1093, %v722
  %v1095 = vadd.f32 %v1094, %v730
  %v1096 = vadd.f32 %v1095, %v738
  %v1097 = vadd.f32 %v1096, %v746
  %v1098 = vadd.f32 %v1097, %v754
  %v1099 = vadd.f32 %v1098, %v762
  %v1100 = vadd.f32 %v1099, %v770
  %v1101 = vadd.f32 %v1100, %v778
  %v1102 = vadd.f32 %v1101, %v786
  %v1103 = vadd.f32 %v1102, %v794
  %v1104 = vadd.f32 %v1103, %v802
  %v1105 = vadd.f32 %v1104, %v810
  %v1106 = vadd.f32 %v1105, %v818
  %v1107 = vadd.f32 %v1106, %v826
  %v1108 = vadd.f32 %v1107, %v834
  %v1109 = vadd.f32 %v1108, %v842
  %v1110 = vadd.f32 %v1109, %v850
  %v1111 = vadd.f32 %v1110, %v858
  %v1112 = vadd.f32 %v1111, %v866
  %v1113 = vadd.f32 %v1112, %v874
  %v1114 = vadd.f32 %v1113, %v882
  %v1115 = vadd.f32 %v1114, %v890
  %v1116 = vadd.f32 %v1115, %v898
  %v1117 = vadd.f32 %v1116, %v906
  %v1118 = vadd.f32 %v1117, %v914
  %v1119 = vadd.f32 %v1118, %v922
  %v1120 = vadd.f32 %v1119, %v930
  %v1121 = vadd.f32 %v1120, %v938
  %v1122 = vadd.f32 %v1121, %v946
  %v1123 = vadd.f32 %v1122, %v954
  %v1124 = vadd.f32 %v1123, %v962
  %v1125 = vadd.f32 %v1124, %v970
  %v1126 = vadd.f32 %v1125, %v978
  %v1127 = vadd.f32 %v1126, %v986
  %v1128 = vadd.f32 %v1127, %v994
  %v1129 = vadd.f32 %v1128, %v1002
  %v1130 = vadd.f32 %v1129, %v1010
  %v1131 = vadd.f32 %v1130, %v1018
  %v1132 = vadd.f32 %v1131, %v1026
  %v1133 = vadd.f32 %v1132, %v1034
  %v1134 = vadd.f32 %v1133, %v1042
  %v1135 = vadd.f32 %v1134, %v1050
  %v1136 = vadd.f32 %v1135, %v1058
  %v1137 = vadd.f32 %v555, %v563
  %v1138 = vadd.f32 %v1137, %v571
  %v1139 = vadd.f32 %v1138, %v579
  %v1140 = vadd.f32 %v1139, %v587
  %v1141 = vadd.f32 %v1140, %v595
  %v1142 = vadd.f32 %v1141, %v603
  %v1143 = vadd.f32 %v1142, %v611
  %v1144 = vadd.f32 %v1143, %v619
  %v1145 = vadd.f32 %v1144, %v627
  %v1146 = vadd.f32 %v1145, %v635
  %v1147 = vadd.f32 %v1146, %v643
  %v1148 = vadd.f32 %v1147, %v651
  %v1149 = vadd.f32 %v1148, %v659
  %v1150 = vadd.f32 %v1149, %v667
  %v1151 = vadd.f32 %v1150, %v675
  %v1152 = vadd.f32 %v1151, %v683
  %v1153 = vadd.f32 %v1152, %v691
  %v1154 = vadd.f32 %v1153, %v699
  %v1155 = vadd.f32 %v1154, %v707
  %v1156 = vadd.f32 %v1155, %v715
  %v1157 = vadd.f32 %v1156, %v723
  %v1158 = vadd.f32 %v1157, %v731
  %v1159 = vadd.f32 %v1158, %v739
  %v1160 = vadd.f32 %v1159, %v747
  %v1161 = vadd.f32 %v1160, %v755
  %v1162 = vadd.f32 %v1161, %v763
  %v1163 = vadd.f32 %v1162, %v771
  %v1164 = vadd.f32 %v1163, %v779
  %v1165 = vadd.f32 %v1164, %v787
  %v1166 = vadd.f32 %v1165, %v795
  %v1167 = vadd.f32 %v1166, %v803
  %v1168 = vadd.f32 %v1167, %v811
  %v1169 = vadd.f32 %v1168, %v819
  %v1170 = vadd.f32 %v1169, %v827
  %v1171 = vadd.f32 %v1170, %v835
  %v1172 = vadd.f32 %v1171, %v843
  %v1173 = vadd.f32 %v1172, %v851
  %v1174 = vadd.f32 %v1173, %v859
  %v1175 = vadd.f32 %v1174, %v867
  %v1176 = vadd.f32 %v1175, %v875
  %v1177 = vadd.f32 %v1176, %v883
  %v1178 = vadd.f32 %v1177, %v891
  %v1179 = vadd.f32 %v1178, %v899
  %v1180 = vadd.f32 %v1179, %v907
  %v1181 = vadd.f32 %v1180, %v915
  %v1182 = vadd.f32 %v1181, %v923
  %v1183 = vadd.f32 %v1182, %v931
  %v1184 = vadd.f32 %v1183, %v939
  %v1185 = vadd.f32 %v1184, %v947
  %v1186 = vadd.f32 %v1185, %v955
  %v1187 = vadd.f32 %v1186, %v963
  %v1188 = vadd.f32 %v1187, %v971
  %v1189 = vadd.f32 %v1188, %v979
  %v1190 = vadd.f32 %v1189, %v987
  %v1191 = vadd.f32 %v1190, %v995
  %v1192 = vadd.f32 %v1191, %v1003
  %v1193 = vadd.f32 %v1192, %v1011
  %v1194 = vadd.f32 %v1193, %v1019
  %v1195 = vadd.f32 %v1194, %v1027
  %v1196 = vadd.f32 %v1195, %v1035
  %v1197 = vadd.f32 %v1196, %v1043
  %v1198 = vadd.f32 %v1197, %v1051
  %v1199 = vadd.f32 %v1198, %v1059
  %v1200 = vadd.f32 %v556, %v564
  %v1201 = vadd.f32 %v1200, %v572
  %v1202 = vadd.f32 %v1201, %v580
  %v1203 = vadd.f32 %v1202, %v588
  %v1204 = vadd.f32 %v1203, %v596
  %v1205 = vadd.f32 %v1204, %v604
  %v1206 = vadd.f32 %v1205, %v612
  %v1207 = vadd.f32 %v1206, %v620
  %v1208 = vadd.f32 %v1207, %v628
  %v1209 = vadd.f32 %v1208, %v636
  %v1210 = vadd.f32 %v1209, %v644
  %v1211 = vadd.f32 %v1210, %v652
  %v1212 = vadd.f32 %v1211, %v660
  %v1213 = vadd.f32 %v1212, %v668
  %v1214 = vadd.f32 %v1213, %v676
  %v1215 = vadd.f32 %v1214, %v684
  %v1216 = vadd.f32 %v1215, %v692
  %v1217 = vadd.f32 %v1216, %v700
  %v1218 = vadd.f32 %v1217, %v708
  %v1219 = vadd.f32 %v1218, %v716
  %v1220 = vadd.f32 %v1219, %v724
  %v1221 = vadd.f32 %v1220, %v732
  %v1222 = vadd.f32 %v1221, %v740
  %v1223 = vadd.f32 %v1222, %v748
  %v1224 = vadd.f32 %v1223, %v756
  %v1225 = vadd.f32 %v1224, %v764
  %v1226 = vadd.f32 %v1225, %v772
  %v1227 = vadd.f32 %v1226, %v780
  %v1228 = vadd.f32 %v1227, %v788
  %v1229 = vadd.f32 %v1228, %v796
  %v1230 = vadd.f32 %v1229, %v804
  %v1231 = vadd.f32 %v1230, %v812
  %v1232 = vadd.f32 %v1231, %v820
  %v1233 = vadd.f32 %v1232, %v828
  %v1234 = vadd.f32 %v1233, %v836
  %v1235 = vadd.f32 %v1234, %v844
  %v1236 = vadd.f32 %v1235, %v852
  %v1237 = vadd.f32 %v1236, %v860
  %v1238 = vadd.f32 %v1237, %v868
  %v1239 = vadd.f32 %v1238, %v876
  %v1240 = vadd.f32 %v1239, %v884
  %v1241 = vadd.f32 %v1240, %v892
  %v1242 = vadd.f32 %v1241, %v900
  %v1243 = vadd.f32 %v1242, %v908
  %v1244 = vadd.f32 %v1243, %v916
  %v1245 = vadd.f32 %v1244, %v924
  %v1246 = vadd.f32 %v1245, %v932
  %v1247 = vadd.f32 %v1246, %v940
  %v1248 = vadd.f32 %v1247, %v948
  %v1249 = vadd.f32 %v1248, %v956
  %v1250 = vadd.f32 %v1249, %v964
  %v1251 = vadd.f32 %v1250, %v972
  %v1252 = vadd.f32 %v1251, %v980
  %v1253 = vadd.f32 %v1252, %v988
  %v1254 = vadd.f32 %v1253, %v996
  %v1255 = vadd.f32 %v1254, %v1004
  %v1256 = vadd.f32 %v1255, %v1012
  %v1257 = vadd.f32 %v1256, %v1020
  %v1258 = vadd.f32 %v1257, %v1028
  %v1259 = vadd.f32 %v1258, %v1036
  %v1260 = vadd.f32 %v1259, %v1044
  %v1261 = vadd.f32 %v1260, %v1052
  %v1262 = vadd.f32 %v1261, %v1060
  %v1263 = vadd.f32 %v557, %v565
  %v1264 = vadd.f32 %v1263, %v573
  %v1265 = vadd.f32 %v1264, %v581
  %v1266 = vadd.f32 %v1265, %v589
  %v1267 = vadd.f32 %v1266, %v597
  %v1268 = vadd.f32 %v1267, %v605
  %v1269 = vadd.f32 %v1268, %v613
  %v1270 = vadd.f32 %v1269, %v621
  %v1271 = vadd.f32 %v1270, %v629
  %v1272 = vadd.f32 %v1271, %v637
  %v1273 = vadd.f32 %v1272, %v645
  %v1274 = vadd.f32 %v1273, %v653
  %v1275 = vadd.f32 %v1274, %v661
  %v1276 = vadd.f32 %v1275, %v669
  %v1277 = vadd.f32 %v1276, %v677
  %v1278 = vadd.f32 %v1277, %v685
  %v1279 = vadd.f32 %v1278, %v693
  %v1280 = vadd.f32 %v1279, %v701
  %v1281 = vadd.f32 %v1280, %v709
  %v1282 = vadd.f32 %v1281, %v717
  %v1283 = vadd.f32 %v1282, %v725
  %v1284 = vadd.f32 %v1283, %v733
  %v1285 = vadd.f32 %v1284, %v741
  %v1286 = vadd.f32 %v1285, %v749
  %v1287 = vadd.f32 %v1286, %v757
  %v1288 = vadd.f32 %v1287, %v765
  %v1289 = vadd.f32 %v1288, %v773
  %v1290 = vadd.f32 %v1289, %v781
  %v1291 = vadd.f32 %v1290, %v789
  %v1292 = vadd.f32 %v1291, %v797
  %v1293 = vadd.f32 %v1292, %v805
  %v1294 = vadd.f32 %v1293, %v813
  %v1295 = vadd.f32 %v1294, %v821
  %v1296 = vadd.f32 %v1295, %v829
  %v1297 = vadd.f32 %v1296, %v837
  %v1298 = vadd.f32 %v1297, %v845
  %v1299 = vadd.f32 %v1298, %v853
  %v1300 = vadd.f32 %v1299, %v861
  %v1301 = vadd.f32 %v1300, %v869
  %v1302 = vadd.f32 %v1301, %v877
  %v1303 = vadd.f32 %v1302, %v885
  %v1304 = vadd.f32 %v1303, %v893
  %v1305 = vadd.f32 %v1304, %v901
  %v1306 = vadd.f32 %v1305, %v909
  %v1307 = vadd.f32 %v1306, %v917
  %v1308 = vadd.f32 %v1307, %v925
  %v1309 = vadd.f32 %v1308, %v933
  %v1310 = vadd.f32 %v1309, %v941
  %v1311 = vadd.f32 %v1310, %v949
  %v1312 = vadd.f32 %v1311, %v957
  %v1313 = vadd.f32 %v1312, %v965
  %v1314 = vadd.f32 %v1313, %v973
  %v1315 = vadd.f32 %v1314, %v981
  %v1316 = vadd.f32 %v1315, %v989
  %v1317 = vadd.f32 %v1316, %v997
  %v1318 = vadd.f32 %v1317, %v1005
  %v1319 = vadd.f32 %v1318, %v1013
  %v1320 = vadd.f32 %v1319, %v1021
  %v1321 = vadd.f32 %v1320, %v1029
  %v1322 = vadd.f32 %v1321, %v1037
  %v1323 = vadd.f32 %v1322, %v1045
  %v1324 = vadd.f32 %v1323, %v1053
  %v1325 = vadd.f32 %v1324, %v1061
  %v1326 = vadd.f32 %v558, %v566
  %v1327 = vadd.f32 %v1326, %v574
  %v1328 = vadd.f32 %v1327, %v582
  %v1329 = vadd.f32 %v1328, %v590
  %v1330 = vadd.f32 %v1329, %v598
  %v1331 = vadd.f32 %v1330, %v606
  %v1332 = vadd.f32 %v1331, %v614
  %v1333 = vadd.f32 %v1332, %v622
  %v1334 = vadd.f32 %v1333, %v630
  %v1335 = vadd.f32 %v1334, %v638
  %v1336 = vadd.f32 %v1335, %v646
  %v1337 = vadd.f32 %v1336, %v654
  %v1338 = vadd.f32 %v1337, %v662
  %v1339 = vadd.f32 %v1338, %v670
  %v1340 = vadd.f32 %v1339, %v678
  %v1341 = vadd.f32 %v1340, %v686
  %v1342 = vadd.f32 %v1341, %v694
  %v1343 = vadd.f32 %v1342, %v702
  %v1344 = vadd.f32 %v1343, %v710
  %v1345 = vadd.f32 %v1344, %v718
  %v1346 = vadd.f32 %v1345, %v726
  %v1347 = vadd.f32 %v1346, %v734
  %v1348 = vadd.f32 %v1347, %v742
  %v1349 = vadd.f32 %v1348, %v750
  %v1350 = vadd.f32 %v1349, %v758
  %v1351 = vadd.f32 %v1350, %v766
  %v1352 = vadd.f32 %v1351, %v774
  %v1353 = vadd.f32 %v1352, %v782
  %v1354 = vadd.f32 %v1353, %v790
  %v1355 = vadd.f32 %v1354, %v798
  %v1356 = vadd.f32 %v1355, %v806
  %v1357 = vadd.f32 %v1356, %v814
  %v1358 = vadd.f32 %v1357, %v822
  %v1359 = vadd.f32 %v1358, %v830
  %v1360 = vadd.f32 %v1359, %v838
  %v1361 = vadd.f32 %v1360, %v846
  %v1362 = vadd.f32 %v1361, %v854
  %v1363 = vadd.f32 %v1362, %v862
  %v1364 = vadd.f32 %v1363, %v870
  %v1365 = vadd.f32 %v1364, %v878
  %v1366 = vadd.f32 %v1365, %v886
  %v1367 = vadd.f32 %v1366, %v894
  %v1368 = vadd.f32 %v1367, %v902
  %v1369 = vadd.f32 %v1368, %v910
  %v1370 = vadd.f32 %v1369, %v918
  %v1371 = vadd.f32 %v1370, %v926
  %v1372 = vadd.f32 %v1371, %v934
  %v1373 = vadd.f32 %v1372, %v942
  %v1374 = vadd.f32 %v1373, %v950
  %v1375 = vadd.f32 %v1374, %v958
  %v1376 = vadd.f32 %v1375, %v966
  %v1377 = vadd.f32 %v1376, %v974
  %v1378 = vadd.f32 %v1377, %v982
  %v1379 = vadd.f32 %v1378, %v990
  %v1380 = vadd.f32 %v1379, %v998
  %v1381 = vadd.f32 %v1380, %v1006
  %v1382 = vadd.f32 %v1381, %v1014
  %v1383 = vadd.f32 %v1382, %v1022
  %v1384 = vadd.f32 %v1383, %v1030
  %v1385 = vadd.f32 %v1384, %v1038
  %v1386 = vadd.f32 %v1385, %v1046
  %v1387 = vadd.f32 %v1386, %v1054
  %v1388 = vadd.f32 %v1387, %v1062
  %v1389 = vadd.f32 %v559, %v567
  %v1390 = vadd.f32 %v1389, %v575
  %v1391 = vadd.f32 %v1390, %v583
  %v1392 = vadd.f32 %v1391, %v591
  %v1393 = vadd.f32 %v1392, %v599
  %v1394 = vadd.f32 %v1393, %v607
  %v1395 = vadd.f32 %v1394, %v615
  %v1396 = vadd.f32 %v1395, %v623
  %v1397 = vadd.f32 %v1396, %v631
  %v1398 = vadd.f32 %v1397, %v639
  %v1399 = vadd.f32 %v1398, %v647
  %v1400 = vadd.f32 %v1399, %v655
  %v1401 = vadd.f32 %v1400, %v663
  %v1402 = vadd.f32 %v1401, %v671
  %v1403 = vadd.f32 %v1402, %v679
  %v1404 = vadd.f32 %v1403, %v687
  %v1405 = vadd.f32 %v1404, %v695
  %v1406 = vadd.f32 %v1405, %v703
  %v1407 = vadd.f32 %v1406, %v711
  %v1408 = vadd.f32 %v1407, %v719
  %v1409 = vadd.f32 %v1408, %v727
  %v1410 = vadd.f32 %v1409, %v735
  %v1411 = vadd.f32 %v1410, %v743
  %v1412 = vadd.f32 %v1411, %v751
  %v1413 = vadd.f32 %v1412, %v759
  %v1414 = vadd.f32 %v1413, %v767
  %v1415 = vadd.f32 %v1414, %v775
  %v1416 = vadd.f32 %v1415, %v783
  %v1417 = vadd.f32 %v1416, %v791
  %v1418 = vadd.f32 %v1417, %v799
  %v1419 = vadd.f32 %v1418, %v807
  %v1420 = vadd.f32 %v1419, %v815
  %v1421 = vadd.f32 %v1420, %v823
  %v1422 = vadd.f32 %v1421, %v831
  %v1423 = vadd.f32 %v1422, %v839
  %v1424 = vadd.f32 %v1423, %v847
  %v1425 = vadd.f32 %v1424, %v855
  %v1426 = vadd.f32 %v1425, %v863
  %v1427 = vadd.f32 %v1426, %v871
  %v1428 = vadd.f32 %v1427, %v879
  %v1429 = vadd.f32 %v1428, %v887
  %v1430 = vadd.f32 %v1429, %v895
  %v1431 = vadd.f32 %v1430, %v903
  %v1432 = vadd.f32 %v1431, %v911
  %v1433 = vadd.f32 %v1432, %v919
  %v1434 = vadd.f32 %v1433, %v927
  %v1435 = vadd.f32 %v1434, %v935
  %v1436 = vadd.f32 %v1435, %v943
  %v1437 = vadd.f32 %v1436, %v951
  %v1438 = vadd.f32 %v1437, %v959
  %v1439 = vadd.f32 %v1438, %v967
  %v1440 = vadd.f32 %v1439, %v975
  %v1441 = vadd.f32 %v1440, %v983
  %v1442 = vadd.f32 %v1441, %v991
  %v1443 = vadd.f32 %v1442, %v999
  %v1444 = vadd.f32 %v1443, %v1007
  %v1445 = vadd.f32 %v1444, %v1015
  %v1446 = vadd.f32 %v1445, %v1023
  %v1447 = vadd.f32 %v1446, %v1031
  %v1448 = vadd.f32 %v1447, %v1039
  %v1449 = vadd.f32 %v1448, %v1047
  %v1450 = vadd.f32 %v1449, %v1055
  %v1451 = vadd.f32 %v1450, %v1063
  %v1452 = vadd.f32 %v560, %v568
  %v1453 = vadd.f32 %v1452, %v576
  %v1454 = vadd.f32 %v1453, %v584
  %v1455 = vadd.f32 %v1454, %v592
  %v1456 = vadd.f32 %v1455, %v600
  %v1457 = vadd.f32 %v1456, %v608
  %v1458 = vadd.f32 %v1457, %v616
  %v1459 = vadd.f32 %v1458, %v624
  %v1460 = vadd.f32 %v1459, %v632
  %v1461 = vadd.f32 %v1460, %v640
  %v1462 = vadd.f32 %v1461, %v648
  %v1463 = vadd.f32 %v1462, %v656
  %v1464 = vadd.f32 %v1463, %v664
  %v1465 = vadd.f32 %v1464, %v672
  %v1466 = vadd.f32 %v1465, %v680
  %v1467 = vadd.f32 %v1466, %v688
  %v1468 = vadd.f32 %v1467, %v696
  %v1469 = vadd.f32 %v1468, %v704
  %v1470 = vadd.f32 %v1469, %v712
  %v1471 = vadd.f32 %v1470, %v720
  %v1472 = vadd.f32 %v1471, %v728
  %v1473 = vadd.f32 %v1472, %v736
  %v1474 = vadd.f32 %v1473, %v744
  %v1475 = vadd.f32 %v1474, %v752
  %v1476 = vadd.f32 %v1475, %v760
  %v1477 = vadd.f32 %v1476, %v768
  %v1478 = vadd.f32 %v1477, %v776
  %v1479 = vadd.f32 %v1478, %v784
  %v1480 = vadd.f32 %v1479, %v792
  %v1481 = vadd.f32 %v1480, %v800
  %v1482 = vadd.f32 %v1481, %v808
  %v1483 = vadd.f32 %v1482, %v816
  %v1484 = vadd.f32 %v1483, %v824
  %v1485 = vadd.f32 %v1484, %v832
  %v1486 = vadd.f32 %v1485, %v840
  %v1487 = vadd.f32 %v1486, %v848
  %v1488 = vadd.f32 %v1487, %v856
  %v1489 = vadd.f32 %v1488, %v864
  %v1490 = vadd.f32 %v1489, %v872
  %v1491 = vadd.f32 %v1490, %v880
  %v1492 = vadd.f32 %v1491, %v888
  %v1493 = vadd.f32 %v1492, %v896
  %v1494 = vadd.f32 %v1493, %v904
  %v1495 = vadd.f32 %v1494, %v912
  %v1496 = vadd.f32 %v1495, %v920
  %v1497 = vadd.f32 %v1496, %v928
  %v1498 = vadd.f32 %v1497, %v936
  %v1499 = vadd.f32 %v1498, %v944
  %v1500 = vadd.f32 %v1499, %v952
  %v1501 = vadd.f32 %v1500, %v960
  %v1502 = vadd.f32 %v1501, %v968
  %v1503 = vadd.f32 %v1502, %v976
  %v1504 = vadd.f32 %v1503, %v984
  %v1505 = vadd.f32 %v1504, %v992
  %v1506 = vadd.f32 %v1505, %v1000
  %v1507 = vadd.f32 %v1506, %v1008
  %v1508 = vadd.f32 %v1507, %v1016
  %v1509 = vadd.f32 %v1508, %v1024
  %v1510 = vadd.f32 %v1509, %v1032
  %v1511 = vadd.f32 %v1510, %v1040
  %v1512 = vadd.f32 %v1511, %v1048
  %v1513 = vadd.f32 %v1512, %v1056
  %v1514 = vadd.f32 %v1513, %v1064
  %v1515 = vadd.f32 %v561, %v569
  %v1516 = vadd.f32 %v1515, %v577
  %v1517 = vadd.f32 %v1516, %v585
  %v1518 = vadd.f32 %v1517, %v593
  %v1519 = vadd.f32 %v1518, %v601
  %v1520 = vadd.f32 %v1519, %v609
  %v1521 = vadd.f32 %v1520, %v617
  %v1522 = vadd.f32 %v1521, %v625
  %v1523 = vadd.f32 %v1522, %v633
  %v1524 = vadd.f32 %v1523, %v641
  %v1525 = vadd.f32 %v1524, %v649
  %v1526 = vadd.f32 %v1525, %v657
  %v1527 = vadd.f32 %v1526, %v665
  %v1528 = vadd.f32 %v1527, %v673
  %v1529 = vadd.f32 %v1528, %v681
  %v1530 = vadd.f32 %v1529, %v689
  %v1531 = vadd.f32 %v1530, %v697
  %v1532 = vadd.f32 %v1531, %v705
  %v1533 = vadd.f32 %v1532, %v713
  %v1534 = vadd.f32 %v1533, %v721
  %v1535 = vadd.f32 %v1534, %v729
  %v1536 = vadd.f32 %v1535, %v737
  %v1537 = vadd.f32 %v1536, %v745
  %v1538 = vadd.f32 %v1537, %v753
  %v1539 = vadd.f32 %v1538, %v761
  %v1540 = vadd.f32 %v1539, %v769
  %v1541 = vadd.f32 %v1540, %v777
  %v1542 = vadd.f32 %v1541, %v785
  %v1543 = vadd.f32 %v1542, %v793
  %v1544 = vadd.f32 %v1543, %v801
  %v1545 = vadd.f32 %v1544, %v809
  %v1546 = vadd.f32 %v1545, %v817
  %v1547 = vadd.f32 %v1546, %v825
  %v1548 = vadd.f32 %v1547, %v833
  %v1549 = vadd.f32 %v1548, %v841
  %v1550 = vadd.f32 %v1549, %v849
  %v1551 = vadd.f32 %v1550, %v857
  %v1552 = vadd.f32 %v1551, %v865
  %v1553 = vadd.f32 %v1552, %v873
  %v1554 = vadd.f32 %v1553, %v881
  %v1555 = vadd.f32 %v1554, %v889
  %v1556 = vadd.f32 %v1555, %v897
  %v1557 = vadd.f32 %v1556, %v905
  %v1558 = vadd.f32 %v1557, %v913
  %v1559 = vadd.f32 %v1558, %v921
  %v1560 = vadd.f32 %v1559, %v929
  %v1561 = vadd.f32 %v1560, %v937
  %v1562 = vadd.f32 %v1561, %v945
  %v1563 = vadd.f32 %v1562, %v953
  %v1564 = vadd.f32 %v1563, %v961
  %v1565 = vadd.f32 %v1564, %v969
  %v1566 = vadd.f32 %v1565, %v977
  %v1567 = vadd.f32 %v1566, %v985
  %v1568 = vadd.f32 %v1567, %v993
  %v1569 = vadd.f32 %v1568, %v1001
  %v1570 = vadd.f32 %v1569, %v1009
  %v1571 = vadd.f32 %v1570, %v1017
  %v1572 = vadd.f32 %v1571, %v1025
  %v1573 = vadd.f32 %v1572, %v1033
  %v1574 = vadd.f32 %v1573, %v1041
  %v1575 = vadd.f32 %v1574, %v1049
  %v1576 = vadd.f32 %v1575, %v1057
  %v1577 = vadd.f32 %v1576, %v1065
  %v1578 = vadd.f32 %v1066, %v1136
  %v1579 = vadd.f32 %v1067, %v1199
  %v1580 = vadd.f32 %v1068, %v1262
  %v1581 = vadd.f32 %v1069, %v1325
  %v1582 = vadd.f32 %v1070, %v1388
  %v1583 = vadd.f32 %v1071, %v1451
  %v1584 = vadd.f32 %v1072, %v1514
  %v1585 = vadd.f32 %v1073, %v1577
  %1586 = vst [vmem:[#allocation2] sm:$0xff] %v1578
  %1587 = vst [vmem:[#allocation2 + $0x8] sm:$0xff] %v1579
  %1588 = vst [vmem:[#allocation2 + $0x10] sm:$0xff] %v1580
  %1589 = vst [vmem:[#allocation2 + $0x18] sm:$0xff] %v1581
  %1590 = vst [vmem:[#allocation2 + $0x20] sm:$0xff] %v1582
  %1591 = vst [vmem:[#allocation2 + $0x28] sm:$0xff] %v1583
  %1592 = vst [vmem:[#allocation2 + $0x30] sm:$0xff] %v1584
  %1593 = vst [vmem:[#allocation2 + $0x38] sm:$0xff] %v1585
  // Predicated region
  $region10: #{emb_loss.1} parent=0 // pred_check
    %p1594 = pneg %p30
  $region11: #{emb_loss.1} parent=0 // pred_check_branch
    %1596 = sbr.rel (%p1594) target = $region13
  $region12: #{emb_loss.1} parent=0 // pred_region
    %v1597 = vld [vmem:[#allocation2] sm:$0xff]
    %v1598 = vld [vmem:[#allocation2 + $0x8] sm:$0xff]
    %v1599 = vld [vmem:[#allocation2 + $0x10] sm:$0xff]
    %v1600 = vld [vmem:[#allocation2 + $0x18] sm:$0xff]
    %v1601 = vld [vmem:[#allocation2 + $0x20] sm:$0xff]
    %v1602 = vld [vmem:[#allocation2 + $0x28] sm:$0xff]
    %v1603 = vld [vmem:[#allocation2 + $0x30] sm:$0xff]
    %v1604 = vld [vmem:[#allocation2 + $0x38] sm:$0xff]
    %1605 = vst [vmem:[%s1] sm:$0xff] %v1597
    %1606 = vst [vmem:[%s1 + $0x8] sm:$0xff] %v1598
    %1607 = vst [vmem:[%s1 + $0x10] sm:$0xff] %v1599
    %1608 = vst [vmem:[%s1 + $0x18] sm:$0xff] %v1600
    %1609 = vst [vmem:[%s1 + $0x20] sm:$0xff] %v1601
    %1610 = vst [vmem:[%s1 + $0x28] sm:$0xff] %v1602
    %1611 = vst [vmem:[%s1 + $0x30] sm:$0xff] %v1603
    %1612 = vst [vmem:[%s1 + $0x38] sm:$0xff] %v1604
  $region13: #{emb_loss.1} parent=0 // pred_fallthru
    _
  // Predicated region
  $region14: #{emb_loss.1} parent=0 // pred_check
    _
  $region15: #{emb_loss.1} parent=0 // pred_check_branch
    %1614 = sbr.rel (0) target = $region17
  $region16: #{emb_loss.1} parent=0 // pred_region
    _
  $region17: #{emb_loss.1} parent=0 // pred_fallthru
    _
  // Predicated region
  $region18: #{emb_loss.1} parent=0 // pred_check
    _
  $region19: #{emb_loss.1} parent=0 // pred_check_branch
    %1616 = sbr.rel (0) target = $region21
  $region20: #{emb_loss.1} parent=0 // pred_region
    _
  $region21: #{emb_loss.1} parent=0 // pred_fallthru
    _

</llo_original>
